<compile_context>
chip_gen: v5e
topology: v5e:2x2
jax: 0.10.0
libtpu: 0.0.40
codegen_flags: <defaults>
</compile_context>

<pallas_src>
import functools

import jax
import jax.numpy as jnp
from jax import lax
from jax.experimental import pallas as pl
from jax.experimental.pallas import tpu as pltpu

HEADS = 2
NEG_SLOPE = 0.2   # HANConv default negative_slope
LANE = 128        # final output padded to a full lane width -> unmasked vst
NEG_BIG = 1e30


# ---------------------------------------------------------------------------
# In-kernel helper (operates on values, not refs)
# ---------------------------------------------------------------------------
def _edge_attention(xs, xd, att_src_bd, att_dst_bd, adj, adj_bias, heads):
    """Dense masked multi-head attention for one edge type (HANConv message+softmax+aggr+relu).

    xs: [Ns, H*D] projected source features, xd: [Nd, H*D] projected destination features.
    att_*_bd: [H*D, H] block-diagonal attention vectors (column h holds att[h] in rows
              h*D:(h+1)*D), so one MXU matmul yields both heads' per-node scores.
    adj: [Nd, Ns] dense {0,1} mask; adj_bias = (adj-1)*1e30 additive mask.
    Returns relu(aggregated messages) as [Nd, H*D] (heads concatenated on the lane axis).
    """
    hd = xs.shape[-1]
    d = hd // heads
    # a_src already transposed: [H, Ns] with Ns on the lane axis -> no XLU transpose below.
    a_src_t = lax.dot_general(att_src_bd, xs, (((0,), (1,)), ((), ())),
                              preferred_element_type=jnp.float32)         # [H, Ns]
    a_dst = jnp.dot(xd, att_dst_bd, preferred_element_type=jnp.float32)   # [Nd, H]
    lane = lax.broadcasted_iota(jnp.int32, (1, hd), 1)
    out = None
    for h in range(heads):                                   # static unroll, H == 2
        s = a_dst[:, h:h + 1] + a_src_t[h:h + 1, :]          # [Nd, Ns]
        s = jnp.maximum(s, NEG_SLOPE * s)                    # leaky_relu (0 < slope < 1)
        s = s + adj_bias                                     # additive mask, no cmp+select
        m = jnp.max(s, axis=-1, keepdims=True)
        p = jnp.exp(s - m) * adj                             # adj multiply = 0-in-degree guard
        denom = jnp.sum(p, axis=-1, keepdims=True)
        inv = pl.reciprocal(jnp.where(denom > 0.0, denom, 1.0), approx=True)  # EUP slot
        alpha = p * inv                                      # softmax over incoming edges
        # Aggregate straight into head h's lane slice of the [Nd, H*D] output layout:
        # zero the other head's lanes of xs and accumulate -> no lane concatenate.
        head_mask = ((lane >= h * d) & (lane < (h + 1) * d)).astype(xs.dtype)
        o_h = jnp.dot(alpha, xs * head_mask, preferred_element_type=jnp.float32)
        out = o_h if out is None else out + o_h
    return jnp.maximum(out, 0.0)                             # F.relu


# ---------------------------------------------------------------------------
# Fully fused forward kernel (one grid step == one graph)
# ---------------------------------------------------------------------------
def _han_fused_kernel(x_obj_ref, x_rel_ref,
                      adj_ro_ref, adjb_ro_ref, adj_or_ref, adjb_or_ref,
                      w1o_ref, b1o_ref, w1r_ref, b1r_ref,
                      a1s_ro_ref, a1d_ro_ref, a1s_or_ref, a1d_or_ref,
                      w2o_ref, b2o_ref, w2r_ref, b2r_ref,
                      a2s_or_ref, a2d_or_ref,
                      wmlp_ref, bmlp_ref,
                      o_ref, *, heads, is_res):
    f32 = jnp.float32
    x_obj = x_obj_ref[...]              # [No, Fin]
    x_rel = x_rel_ref[...]              # [Nr, Fin]   (Nr padded to a multiple of 8)
    adj_ro, adjb_ro = adj_ro_ref[...], adjb_ro_ref[...]   # [Nr, No]
    adj_or, adjb_or = adj_or_ref[...], adjb_or_ref[...]   # [No, Nr]

    # ---- conv1: per-node-type projection + per-edge-type attention ----
    h_obj = jnp.dot(x_obj, w1o_ref[...], preferred_element_type=f32) + b1o_ref[...]
    h_rel = jnp.dot(x_rel, w1r_ref[...], preferred_element_type=f32) + b1r_ref[...]
    rel1 = _edge_attention(h_obj, h_rel, a1s_ro_ref[...], a1d_ro_ref[...],
                           adj_ro, adjb_ro, heads)
    obj1 = _edge_attention(h_rel, h_obj, a1s_or_ref[...], a1d_or_ref[...],
                           adj_or, adjb_or, heads)

    # ---- conv2: only the 'object' output is consumed downstream ----
    g_obj = jnp.dot(obj1, w2o_ref[...], preferred_element_type=f32) + b2o_ref[...]
    g_rel = jnp.dot(rel1, w2r_ref[...], preferred_element_type=f32) + b2r_ref[...]
    obj2 = _edge_attention(g_rel, g_obj, a2s_or_ref[...], a2d_or_ref[...],
                           adj_or, adjb_or, heads)
    if is_res:
        obj2 = obj2 + obj1              # x['object'] += x_res

    # ---- lin -> lin2 -> lin3 folded offline into ONE affine map (padded to 128 lanes) ----
    y = jnp.dot(obj2, wmlp_ref[...], preferred_element_type=f32) + bmlp_ref[...]
    o_ref[...] = jax.nn.sigmoid(y)      # single unmasked lane-dense store; wrapper slices


def han_forward(params, x_obj, x_rel, adj, out_channels, is_res=True, heads=HEADS):
    """Batched fused forward.

    x_obj: [B, No, Fin], x_rel: [B, Nr, Fin] (Nr padded to a multiple of 8),
    adj: dict with batched 'ro', 'ro_bias', 'or', 'or_bias' dense masks.
    """
    B, n_obj, _ = x_obj.shape
    c1, c2 = params["conv1"], params["conv2"]
    wmlp, bmlp = params["mlp_folded"]["w"], params["mlp_folded"]["b"]
    out_pad = wmlp.shape[1]             # == LANE

    inputs = (
        x_obj, x_rel,
        adj["ro"], adj["ro_bias"], adj["or"], adj["or_bias"],
        c1["proj"]["object"]["w"], c1["proj"]["object"]["b"],
        c1["proj"]["relation"]["w"], c1["proj"]["relation"]["b"],
        c1["att_src"]["object__to__relation"], c1["att_dst"]["object__to__relation"],
        c1["att_src"]["relation__to__object"], c1["att_dst"]["relation__to__object"],
        c2["proj"]["object"]["w"], c2["proj"]["object"]["b"],
        c2["proj"]["relation"]["w"], c2["proj"]["relation"]["b"],
        c2["att_src"]["relation__to__object"], c2["att_dst"]["relation__to__object"],
        wmlp, bmlp,
    )
    n_batched = 6   # first 6 inputs carry a per-graph batch axis

    def batched_spec(a):
        shp = a.shape[1:]
        return pl.BlockSpec((None,) + shp, lambda b, _s=shp: (b,) + (0,) * len(_s))

    def shared_spec(a):
        nd = a.ndim
        return pl.BlockSpec(a.shape, lambda b, _n=nd: (0,) * _n)

    in_specs = ([batched_spec(a) for a in inputs[:n_batched]] +
                [shared_spec(a) for a in inputs[n_batched:]])

    y = pl.pallas_call(
        functools.partial(_han_fused_kernel, heads=heads, is_res=is_res),
        out_shape=jax.ShapeDtypeStruct((B, n_obj, out_pad), jnp.float32),
        grid=(B,),
        in_specs=in_specs,
        out_specs=pl.BlockSpec((None, n_obj, out_pad), lambda b: (b, 0, 0)),
        compiler_params=pltpu.CompilerParams(
            dimension_semantics=("parallel",)),   # v7x: shard graphs across both TCs
    )(*inputs)
    return y[..., :out_channels]


# ---------------------------------------------------------------------------
# Graph / parameter preparation (glue, runs once per graph / per model)
# ---------------------------------------------------------------------------
def build_graph_inputs(x_dict, edge_index_dict, num_nodes, sublane=8):
    """Pad node counts to a multiple of 8 and build dense adjacency + additive masks ONCE."""
    pad = {nt: (-n) % sublane for nt, n in num_nodes.items()}
    n_pad = {nt: num_nodes[nt] + pad[nt] for nt in num_nodes}
    x_obj = jnp.pad(x_dict["object"], ((0, pad["object"]), (0, 0)))
    x_rel = jnp.pad(x_dict["relation"], ((0, pad["relation"]), (0, 0)))

    def dense(et):
        src_t, _, dst_t = et
        ei = edge_index_dict[et]
        a = jnp.zeros((n_pad[dst_t], n_pad[src_t]), jnp.float32)
        return a.at[ei[1], ei[0]].set(1.0)

    adj_ro = dense(("object", "to", "relation"))   # [Nr_pad, No_pad]
    adj_or = dense(("relation", "to", "object"))   # [No_pad, Nr_pad]
    adj = {
        "ro": adj_ro, "ro_bias": (adj_ro - 1.0) * NEG_BIG,
        "or": adj_or, "or_bias": (adj_or - 1.0) * NEG_BIG,
    }
    return x_obj, x_rel, adj


def _block_diag_att(key, heads, d):
    """[H, D] attention vectors embedded as a [H*D, H] block-diagonal matrix."""
    a = jax.random.normal(key, (heads, d), jnp.float32) * 0.1
    bd = jnp.zeros((heads * d, heads), jnp.float32)
    for h in range(heads):
        bd = bd.at[h * d:(h + 1) * d, h].set(a[h])
    return bd


def init_params(key, in_channels, hidden, linear_layer, lh, lh2, out_ch,
                metadata, heads=HEADS):
    node_types, edge_types = metadata
    keys = iter(jax.random.split(key, 64))

    def lin(in_f, out_f):
        w = (jax.random.normal(next(keys), (in_f, out_f), jnp.float32)
             / jnp.sqrt(jnp.float32(in_f)))
        b = jax.random.normal(next(keys), (1, out_f), jnp.float32) * 0.01
        return {"w": w, "b": b}

    def conv(in_f, out_f):
        d = out_f // heads
        return {
            "proj": {nt: lin(in_f, out_f) for nt in node_types},
            "att_src": {"__".join(et): _block_diag_att(next(keys), heads, d)
                        for et in edge_types},
            "att_dst": {"__".join(et): _block_diag_att(next(keys), heads, d)
                        for et in edge_types},
        }

    p = {
        "conv1": conv(in_channels, hidden),
        "conv2": conv(hidden, linear_layer),
        "lin": lin(linear_layer, lh),
        "lin2": lin(lh, lh2),
        "lin3": lin(lh2, out_ch),
    }
    # The reference applies NO activation between lin, lin2 and lin3 (only a final sigmoid),
    # so fold them ONCE into a single affine map, zero-padded to 128 output lanes.
    w = p["lin"]["w"] @ p["lin2"]["w"] @ p["lin3"]["w"]
    b = (p["lin"]["b"] @ p["lin2"]["w"] + p["lin2"]["b"]) @ p["lin3"]["w"] + p["lin3"]["b"]
    pad = LANE - w.shape[1]
    p["mlp_folded"] = {"w": jnp.pad(w, ((0, 0), (0, pad))),
                       "b": jnp.pad(b, ((0, 0), (0, pad)))}
    return p


# ---------------------------------------------------------------------------
if __name__ == "__main__":
    key = jax.random.PRNGKey(0)
    metadata = (["object", "relation"],
                [("object", "to", "relation"), ("relation", "to", "object")])

    in_channels, hidden, linear_layer = 16, 32, 32  # hidden == linear_layer so residual is valid
    lh, lh2, out_ch = 32, 16, 4
    N_obj, N_rel = 8, 6
    B = 4                                           # batch of graphs -> grid axis
    num_nodes = {"object": N_obj, "relation": N_rel}

    k_data, k_par = jax.random.split(key)
    edge_index_dict = {
        ("object", "to", "relation"): jnp.array(
            [[0, 1, 2, 3, 4, 5, 6, 7, 0, 2, 4, 6],
             [0, 0, 1, 1, 2, 2, 3, 3, 4, 4, 5, 5]], dtype=jnp.int32),
        ("relation", "to", "object"): jnp.array(
            [[0, 1, 2, 3, 4, 5, 0, 1],
             [0, 1, 2, 3, 4, 5, 6, 7]], dtype=jnp.int32),
    }

    # Build B graphs (shared topology, per-graph features); graph prep runs once, outside forward.
    xs_obj, xs_rel = [], []
    adj_single = None
    for g in range(B):
        ko, kr = jax.random.split(jax.random.fold_in(k_data, g))
        x_dict = {
            "object": jax.random.normal(ko, (N_obj, in_channels), jnp.float32),
            "relation": jax.random.normal(kr, (N_rel, in_channels), jnp.float32),
        }
        xo, xr, adj_single = build_graph_inputs(x_dict, edge_index_dict, num_nodes)
        xs_obj.append(xo)
        xs_rel.append(xr)
    x_obj_b = jnp.stack(xs_obj)                                     # [B, 8, 16]
    x_rel_b = jnp.stack(xs_rel)                                     # [B, 8, 16] (padded 6->8)
    adj_b = {k: jnp.tile(v[None], (B, 1, 1)) for k, v in adj_single.items()}

    params = init_params(k_par, in_channels, hidden, linear_layer, lh, lh2,
                         out_ch, metadata)

    out = han_forward(params, x_obj_b, x_rel_b, adj_b, out_ch, is_res=True)
    out = jax.block_until_ready(out)
    assert out.shape == (B, N_obj, out_ch)
    assert bool(jnp.all(jnp.isfinite(out)))
    assert bool(jnp.all((out > 0.0) & (out < 1.0)))   # sigmoid range
    print("KERNEL_OK")
</pallas_src>

<mosaic_0001>
module attributes {stable_mosaic.version = 11 : i64} {
  func.func @_han_fused_kernel(%arg0: i32, %arg1: memref<1x8x16xf32, #tpu.memory_space<vmem>>, %arg2: memref<1x8x16xf32, #tpu.memory_space<vmem>>, %arg3: memref<1x8x8xf32, #tpu.memory_space<vmem>>, %arg4: memref<1x8x8xf32, #tpu.memory_space<vmem>>, %arg5: memref<1x8x8xf32, #tpu.memory_space<vmem>>, %arg6: memref<1x8x8xf32, #tpu.memory_space<vmem>>, %arg7: memref<16x32xf32, #tpu.memory_space<vmem>>, %arg8: memref<1x32xf32, #tpu.memory_space<vmem>>, %arg9: memref<16x32xf32, #tpu.memory_space<vmem>>, %arg10: memref<1x32xf32, #tpu.memory_space<vmem>>, %arg11: memref<32x2xf32, #tpu.memory_space<vmem>>, %arg12: memref<32x2xf32, #tpu.memory_space<vmem>>, %arg13: memref<32x2xf32, #tpu.memory_space<vmem>>, %arg14: memref<32x2xf32, #tpu.memory_space<vmem>>, %arg15: memref<32x32xf32, #tpu.memory_space<vmem>>, %arg16: memref<1x32xf32, #tpu.memory_space<vmem>>, %arg17: memref<32x32xf32, #tpu.memory_space<vmem>>, %arg18: memref<1x32xf32, #tpu.memory_space<vmem>>, %arg19: memref<32x2xf32, #tpu.memory_space<vmem>>, %arg20: memref<32x2xf32, #tpu.memory_space<vmem>>, %arg21: memref<32x128xf32, #tpu.memory_space<vmem>>, %arg22: memref<1x128xf32, #tpu.memory_space<vmem>>, %arg23: memref<1x8x128xf32, #tpu.memory_space<vmem>>) attributes {dimension_semantics = [#tpu.dimension_semantics<parallel>], iteration_bounds = array<i64: 4>, scalar_prefetch = 0 : i64, scratch_operands = 0 : i64, tpu.core_type = #tpu.core_type<tc>, window_params = [{transform_indices = @transform_0, window_bounds = array<i64: 1, 8, 16>}, {transform_indices = @transform_1, window_bounds = array<i64: 1, 8, 16>}, {transform_indices = @transform_2, window_bounds = array<i64: 1, 8, 8>}, {transform_indices = @transform_3, window_bounds = array<i64: 1, 8, 8>}, {transform_indices = @transform_4, window_bounds = array<i64: 1, 8, 8>}, {transform_indices = @transform_5, window_bounds = array<i64: 1, 8, 8>}, {pipeline_mode = #tpu.pipeline_mode<synchronous>, transform_indices = @transform_6, window_bounds = array<i64: 16, 32>}, {pipeline_mode = #tpu.pipeline_mode<synchronous>, transform_indices = @transform_7, window_bounds = array<i64: 1, 32>}, {pipeline_mode = #tpu.pipeline_mode<synchronous>, transform_indices = @transform_8, window_bounds = array<i64: 16, 32>}, {pipeline_mode = #tpu.pipeline_mode<synchronous>, transform_indices = @transform_9, window_bounds = array<i64: 1, 32>}, {pipeline_mode = #tpu.pipeline_mode<synchronous>, transform_indices = @transform_10, window_bounds = array<i64: 32, 2>}, {pipeline_mode = #tpu.pipeline_mode<synchronous>, transform_indices = @transform_11, window_bounds = array<i64: 32, 2>}, {pipeline_mode = #tpu.pipeline_mode<synchronous>, transform_indices = @transform_12, window_bounds = array<i64: 32, 2>}, {pipeline_mode = #tpu.pipeline_mode<synchronous>, transform_indices = @transform_13, window_bounds = array<i64: 32, 2>}, {pipeline_mode = #tpu.pipeline_mode<synchronous>, transform_indices = @transform_14, window_bounds = array<i64: 32, 32>}, {pipeline_mode = #tpu.pipeline_mode<synchronous>, transform_indices = @transform_15, window_bounds = array<i64: 1, 32>}, {pipeline_mode = #tpu.pipeline_mode<synchronous>, transform_indices = @transform_16, window_bounds = array<i64: 32, 32>}, {pipeline_mode = #tpu.pipeline_mode<synchronous>, transform_indices = @transform_17, window_bounds = array<i64: 1, 32>}, {pipeline_mode = #tpu.pipeline_mode<synchronous>, transform_indices = @transform_18, window_bounds = array<i64: 32, 2>}, {pipeline_mode = #tpu.pipeline_mode<synchronous>, transform_indices = @transform_19, window_bounds = array<i64: 32, 2>}, {pipeline_mode = #tpu.pipeline_mode<synchronous>, transform_indices = @transform_20, window_bounds = array<i64: 32, 128>}, {pipeline_mode = #tpu.pipeline_mode<synchronous>, transform_indices = @transform_21, window_bounds = array<i64: 1, 128>}, {transform_indices = @transform_22, window_bounds = array<i64: 1, 8, 128>}]} {
    %c0 = arith.constant 0 : index
    %c0_0 = arith.constant 0 : index
    %c0_1 = arith.constant 0 : index
    %0 = vector.load %arg1[%c0, %c0_0, %c0_1] : memref<1x8x16xf32, #tpu.memory_space<vmem>>, vector<1x8x16xf32>
    %1 = vector.shape_cast %0 : vector<1x8x16xf32> to vector<8x16xf32>
    %c0_2 = arith.constant 0 : index
    %c0_3 = arith.constant 0 : index
    %c0_4 = arith.constant 0 : index
    %2 = vector.load %arg2[%c0_2, %c0_3, %c0_4] : memref<1x8x16xf32, #tpu.memory_space<vmem>>, vector<1x8x16xf32>
    %3 = vector.shape_cast %2 : vector<1x8x16xf32> to vector<8x16xf32>
    %c0_5 = arith.constant 0 : index
    %c0_6 = arith.constant 0 : index
    %c0_7 = arith.constant 0 : index
    %4 = vector.load %arg3[%c0_5, %c0_6, %c0_7] : memref<1x8x8xf32, #tpu.memory_space<vmem>>, vector<1x8x8xf32>
    %5 = vector.shape_cast %4 : vector<1x8x8xf32> to vector<8x8xf32>
    %c0_8 = arith.constant 0 : index
    %c0_9 = arith.constant 0 : index
    %c0_10 = arith.constant 0 : index
    %6 = vector.load %arg4[%c0_8, %c0_9, %c0_10] : memref<1x8x8xf32, #tpu.memory_space<vmem>>, vector<1x8x8xf32>
    %7 = vector.shape_cast %6 : vector<1x8x8xf32> to vector<8x8xf32>
    %c0_11 = arith.constant 0 : index
    %c0_12 = arith.constant 0 : index
    %c0_13 = arith.constant 0 : index
    %8 = vector.load %arg5[%c0_11, %c0_12, %c0_13] : memref<1x8x8xf32, #tpu.memory_space<vmem>>, vector<1x8x8xf32>
    %9 = vector.shape_cast %8 : vector<1x8x8xf32> to vector<8x8xf32>
    %c0_14 = arith.constant 0 : index
    %c0_15 = arith.constant 0 : index
    %c0_16 = arith.constant 0 : index
    %10 = vector.load %arg6[%c0_14, %c0_15, %c0_16] : memref<1x8x8xf32, #tpu.memory_space<vmem>>, vector<1x8x8xf32>
    %11 = vector.shape_cast %10 : vector<1x8x8xf32> to vector<8x8xf32>
    %c0_17 = arith.constant 0 : index
    %c0_18 = arith.constant 0 : index
    %12 = vector.load %arg7[%c0_17, %c0_18] : memref<16x32xf32, #tpu.memory_space<vmem>>, vector<16x32xf32>
    %cst = arith.constant dense<0.000000e+00> : vector<8x32xf32>
    %13 = tpu.matmul %1, %12, %cst {dimension_numbers = #tpu.dot_dimension_numbers<[1], [0], [0], [1], [0, 0, 1, 1], [], []>} : vector<8x16xf32>, vector<16x32xf32>, vector<8x32xf32> -> vector<8x32xf32>
    %c0_19 = arith.constant 0 : index
    %c0_20 = arith.constant 0 : index
    %14 = vector.load %arg8[%c0_19, %c0_20] : memref<1x32xf32, #tpu.memory_space<vmem>>, vector<1x32xf32>
    %15 = vector.broadcast %14 : vector<1x32xf32> to vector<8x32xf32>
    %16 = arith.addf %13, %15 : vector<8x32xf32>
    %c0_21 = arith.constant 0 : index
    %c0_22 = arith.constant 0 : index
    %17 = vector.load %arg9[%c0_21, %c0_22] : memref<16x32xf32, #tpu.memory_space<vmem>>, vector<16x32xf32>
    %cst_23 = arith.constant dense<0.000000e+00> : vector<8x32xf32>
    %18 = tpu.matmul %3, %17, %cst_23 {dimension_numbers = #tpu.dot_dimension_numbers<[1], [0], [0], [1], [0, 0, 1, 1], [], []>} : vector<8x16xf32>, vector<16x32xf32>, vector<8x32xf32> -> vector<8x32xf32>
    %c0_24 = arith.constant 0 : index
    %c0_25 = arith.constant 0 : index
    %19 = vector.load %arg10[%c0_24, %c0_25] : memref<1x32xf32, #tpu.memory_space<vmem>>, vector<1x32xf32>
    %20 = vector.broadcast %19 : vector<1x32xf32> to vector<8x32xf32>
    %21 = arith.addf %18, %20 : vector<8x32xf32>
    %c0_26 = arith.constant 0 : index
    %c0_27 = arith.constant 0 : index
    %22 = vector.load %arg11[%c0_26, %c0_27] : memref<32x2xf32, #tpu.memory_space<vmem>>, vector<32x2xf32>
    %c0_28 = arith.constant 0 : index
    %c0_29 = arith.constant 0 : index
    %23 = vector.load %arg12[%c0_28, %c0_29] : memref<32x2xf32, #tpu.memory_space<vmem>>, vector<32x2xf32>
    %cst_30 = arith.constant dense<0.000000e+00> : vector<2x8xf32>
    %24 = tpu.matmul %22, %16, %cst_30 {dimension_numbers = #tpu.dot_dimension_numbers<[0], [1], [1], [0], [0, 1, 1, 0], [], []>} : vector<32x2xf32>, vector<8x32xf32>, vector<2x8xf32> -> vector<2x8xf32>
    %cst_31 = arith.constant dense<0.000000e+00> : vector<8x2xf32>
    %25 = tpu.matmul %21, %23, %cst_31 {dimension_numbers = #tpu.dot_dimension_numbers<[1], [0], [0], [1], [0, 0, 1, 1], [], []>} : vector<8x32xf32>, vector<32x2xf32>, vector<8x2xf32> -> vector<8x2xf32>
    %26 = tpu.iota {dimensions = array<i32: 1>} : vector<1x32xi32>
    %27 = vector.extract_strided_slice %25 {offsets = [0, 0], sizes = [8, 1], strides = [1, 1]} : vector<8x2xf32> to vector<8x1xf32>
    %28 = vector.extract_strided_slice %24 {offsets = [0, 0], sizes = [1, 8], strides = [1, 1]} : vector<2x8xf32> to vector<1x8xf32>
    %29 = vector.broadcast %27 : vector<8x1xf32> to vector<8x8xf32>
    %30 = vector.broadcast %28 : vector<1x8xf32> to vector<8x8xf32>
    %31 = arith.addf %29, %30 : vector<8x8xf32>
    %cst_32 = arith.constant 2.000000e-01 : f32
    %32 = vector.broadcast %cst_32 : f32 to vector<8x8xf32>
    %33 = arith.mulf %32, %31 : vector<8x8xf32>
    %34 = arith.maximumf %31, %33 : vector<8x8xf32>
    %35 = arith.addf %34, %7 : vector<8x8xf32>
    %cst_33 = arith.constant dense<0xFF800000> : vector<8xf32>
    %36 = vector.multi_reduction <maximumf>, %35, %cst_33 [1] : vector<8x8xf32> to vector<8xf32>
    %37 = vector.shape_cast %36 : vector<8xf32> to vector<8x1xf32>
    %38 = vector.broadcast %37 : vector<8x1xf32> to vector<8x8xf32>
    %39 = arith.subf %35, %38 : vector<8x8xf32>
    %40 = math.exp %39 : vector<8x8xf32>
    %41 = arith.mulf %40, %5 : vector<8x8xf32>
    %cst_34 = arith.constant dense<0.000000e+00> : vector<8xf32>
    %42 = vector.multi_reduction <add>, %41, %cst_34 [1] : vector<8x8xf32> to vector<8xf32>
    %43 = vector.shape_cast %42 : vector<8xf32> to vector<8x1xf32>
    %cst_35 = arith.constant 0.000000e+00 : f32
    %44 = vector.broadcast %cst_35 : f32 to vector<8x1xf32>
    %45 = arith.cmpf ogt, %43, %44 : vector<8x1xf32>
    %cst_36 = arith.constant 1.000000e+00 : f32
    %46 = vector.broadcast %cst_36 : f32 to vector<8x1xf32>
    %47 = arith.select %45, %43, %46 : vector<8x1xi1>, vector<8x1xf32>
    %48 = tpu.reciprocal %47 {approx = true} : vector<8x1xf32> -> vector<8x1xf32>
    %49 = vector.broadcast %48 : vector<8x1xf32> to vector<8x8xf32>
    %50 = arith.mulf %41, %49 : vector<8x8xf32>
    %c0_i32 = arith.constant 0 : i32
    %51 = vector.broadcast %c0_i32 : i32 to vector<1x32xi32>
    %52 = arith.cmpi sge, %26, %51 : vector<1x32xi32>
    %c16_i32 = arith.constant 16 : i32
    %53 = vector.broadcast %c16_i32 : i32 to vector<1x32xi32>
    %54 = arith.cmpi slt, %26, %53 : vector<1x32xi32>
    %55 = arith.andi %52, %54 : vector<1x32xi1>
    %56 = arith.extui %55 : vector<1x32xi1> to vector<1x32xi32>
    %57 = arith.sitofp %56 : vector<1x32xi32> to vector<1x32xf32>
    %58 = vector.broadcast %57 : vector<1x32xf32> to vector<8x32xf32>
    %59 = arith.mulf %16, %58 : vector<8x32xf32>
    %cst_37 = arith.constant dense<0.000000e+00> : vector<8x32xf32>
    %60 = tpu.matmul %50, %59, %cst_37 {dimension_numbers = #tpu.dot_dimension_numbers<[1], [0], [0], [1], [0, 0, 1, 1], [], []>} : vector<8x8xf32>, vector<8x32xf32>, vector<8x32xf32> -> vector<8x32xf32>
    %61 = vector.extract_strided_slice %25 {offsets = [0, 1], sizes = [8, 1], strides = [1, 1]} : vector<8x2xf32> to vector<8x1xf32>
    %62 = vector.extract_strided_slice %24 {offsets = [1, 0], sizes = [1, 8], strides = [1, 1]} : vector<2x8xf32> to vector<1x8xf32>
    %63 = vector.broadcast %61 : vector<8x1xf32> to vector<8x8xf32>
    %64 = vector.broadcast %62 : vector<1x8xf32> to vector<8x8xf32>
    %65 = arith.addf %63, %64 : vector<8x8xf32>
    %cst_38 = arith.constant 2.000000e-01 : f32
    %66 = vector.broadcast %cst_38 : f32 to vector<8x8xf32>
    %67 = arith.mulf %66, %65 : vector<8x8xf32>
    %68 = arith.maximumf %65, %67 : vector<8x8xf32>
    %69 = arith.addf %68, %7 : vector<8x8xf32>
    %cst_39 = arith.constant dense<0xFF800000> : vector<8xf32>
    %70 = vector.multi_reduction <maximumf>, %69, %cst_39 [1] : vector<8x8xf32> to vector<8xf32>
    %71 = vector.shape_cast %70 : vector<8xf32> to vector<8x1xf32>
    %72 = vector.broadcast %71 : vector<8x1xf32> to vector<8x8xf32>
    %73 = arith.subf %69, %72 : vector<8x8xf32>
    %74 = math.exp %73 : vector<8x8xf32>
    %75 = arith.mulf %74, %5 : vector<8x8xf32>
    %cst_40 = arith.constant dense<0.000000e+00> : vector<8xf32>
    %76 = vector.multi_reduction <add>, %75, %cst_40 [1] : vector<8x8xf32> to vector<8xf32>
    %77 = vector.shape_cast %76 : vector<8xf32> to vector<8x1xf32>
    %cst_41 = arith.constant 0.000000e+00 : f32
    %78 = vector.broadcast %cst_41 : f32 to vector<8x1xf32>
    %79 = arith.cmpf ogt, %77, %78 : vector<8x1xf32>
    %cst_42 = arith.constant 1.000000e+00 : f32
    %80 = vector.broadcast %cst_42 : f32 to vector<8x1xf32>
    %81 = arith.select %79, %77, %80 : vector<8x1xi1>, vector<8x1xf32>
    %82 = tpu.reciprocal %81 {approx = true} : vector<8x1xf32> -> vector<8x1xf32>
    %83 = vector.broadcast %82 : vector<8x1xf32> to vector<8x8xf32>
    %84 = arith.mulf %75, %83 : vector<8x8xf32>
    %c16_i32_43 = arith.constant 16 : i32
    %85 = vector.broadcast %c16_i32_43 : i32 to vector<1x32xi32>
    %86 = arith.cmpi sge, %26, %85 : vector<1x32xi32>
    %c32_i32 = arith.constant 32 : i32
    %87 = vector.broadcast %c32_i32 : i32 to vector<1x32xi32>
    %88 = arith.cmpi slt, %26, %87 : vector<1x32xi32>
    %89 = arith.andi %86, %88 : vector<1x32xi1>
    %90 = arith.extui %89 : vector<1x32xi1> to vector<1x32xi32>
    %91 = arith.sitofp %90 : vector<1x32xi32> to vector<1x32xf32>
    %92 = vector.broadcast %91 : vector<1x32xf32> to vector<8x32xf32>
    %93 = arith.mulf %16, %92 : vector<8x32xf32>
    %cst_44 = arith.constant dense<0.000000e+00> : vector<8x32xf32>
    %94 = tpu.matmul %84, %93, %cst_44 {dimension_numbers = #tpu.dot_dimension_numbers<[1], [0], [0], [1], [0, 0, 1, 1], [], []>} : vector<8x8xf32>, vector<8x32xf32>, vector<8x32xf32> -> vector<8x32xf32>
    %95 = arith.addf %60, %94 : vector<8x32xf32>
    %cst_45 = arith.constant 0.000000e+00 : f32
    %96 = vector.broadcast %cst_45 : f32 to vector<8x32xf32>
    %97 = arith.maximumf %95, %96 : vector<8x32xf32>
    %c0_46 = arith.constant 0 : index
    %c0_47 = arith.constant 0 : index
    %98 = vector.load %arg13[%c0_46, %c0_47] : memref<32x2xf32, #tpu.memory_space<vmem>>, vector<32x2xf32>
    %c0_48 = arith.constant 0 : index
    %c0_49 = arith.constant 0 : index
    %99 = vector.load %arg14[%c0_48, %c0_49] : memref<32x2xf32, #tpu.memory_space<vmem>>, vector<32x2xf32>
    %cst_50 = arith.constant dense<0.000000e+00> : vector<2x8xf32>
    %100 = tpu.matmul %98, %21, %cst_50 {dimension_numbers = #tpu.dot_dimension_numbers<[0], [1], [1], [0], [0, 1, 1, 0], [], []>} : vector<32x2xf32>, vector<8x32xf32>, vector<2x8xf32> -> vector<2x8xf32>
    %cst_51 = arith.constant dense<0.000000e+00> : vector<8x2xf32>
    %101 = tpu.matmul %16, %99, %cst_51 {dimension_numbers = #tpu.dot_dimension_numbers<[1], [0], [0], [1], [0, 0, 1, 1], [], []>} : vector<8x32xf32>, vector<32x2xf32>, vector<8x2xf32> -> vector<8x2xf32>
    %102 = tpu.iota {dimensions = array<i32: 1>} : vector<1x32xi32>
    %103 = vector.extract_strided_slice %101 {offsets = [0, 0], sizes = [8, 1], strides = [1, 1]} : vector<8x2xf32> to vector<8x1xf32>
    %104 = vector.extract_strided_slice %100 {offsets = [0, 0], sizes = [1, 8], strides = [1, 1]} : vector<2x8xf32> to vector<1x8xf32>
    %105 = vector.broadcast %103 : vector<8x1xf32> to vector<8x8xf32>
    %106 = vector.broadcast %104 : vector<1x8xf32> to vector<8x8xf32>
    %107 = arith.addf %105, %106 : vector<8x8xf32>
    %cst_52 = arith.constant 2.000000e-01 : f32
    %108 = vector.broadcast %cst_52 : f32 to vector<8x8xf32>
    %109 = arith.mulf %108, %107 : vector<8x8xf32>
    %110 = arith.maximumf %107, %109 : vector<8x8xf32>
    %111 = arith.addf %110, %11 : vector<8x8xf32>
    %cst_53 = arith.constant dense<0xFF800000> : vector<8xf32>
    %112 = vector.multi_reduction <maximumf>, %111, %cst_53 [1] : vector<8x8xf32> to vector<8xf32>
    %113 = vector.shape_cast %112 : vector<8xf32> to vector<8x1xf32>
    %114 = vector.broadcast %113 : vector<8x1xf32> to vector<8x8xf32>
    %115 = arith.subf %111, %114 : vector<8x8xf32>
    %116 = math.exp %115 : vector<8x8xf32>
    %117 = arith.mulf %116, %9 : vector<8x8xf32>
    %cst_54 = arith.constant dense<0.000000e+00> : vector<8xf32>
    %118 = vector.multi_reduction <add>, %117, %cst_54 [1] : vector<8x8xf32> to vector<8xf32>
    %119 = vector.shape_cast %118 : vector<8xf32> to vector<8x1xf32>
    %cst_55 = arith.constant 0.000000e+00 : f32
    %120 = vector.broadcast %cst_55 : f32 to vector<8x1xf32>
    %121 = arith.cmpf ogt, %119, %120 : vector<8x1xf32>
    %cst_56 = arith.constant 1.000000e+00 : f32
    %122 = vector.broadcast %cst_56 : f32 to vector<8x1xf32>
    %123 = arith.select %121, %119, %122 : vector<8x1xi1>, vector<8x1xf32>
    %124 = tpu.reciprocal %123 {approx = true} : vector<8x1xf32> -> vector<8x1xf32>
    %125 = vector.broadcast %124 : vector<8x1xf32> to vector<8x8xf32>
    %126 = arith.mulf %117, %125 : vector<8x8xf32>
    %c0_i32_57 = arith.constant 0 : i32
    %127 = vector.broadcast %c0_i32_57 : i32 to vector<1x32xi32>
    %128 = arith.cmpi sge, %102, %127 : vector<1x32xi32>
    %c16_i32_58 = arith.constant 16 : i32
    %129 = vector.broadcast %c16_i32_58 : i32 to vector<1x32xi32>
    %130 = arith.cmpi slt, %102, %129 : vector<1x32xi32>
    %131 = arith.andi %128, %130 : vector<1x32xi1>
    %132 = arith.extui %131 : vector<1x32xi1> to vector<1x32xi32>
    %133 = arith.sitofp %132 : vector<1x32xi32> to vector<1x32xf32>
    %134 = vector.broadcast %133 : vector<1x32xf32> to vector<8x32xf32>
    %135 = arith.mulf %21, %134 : vector<8x32xf32>
    %cst_59 = arith.constant dense<0.000000e+00> : vector<8x32xf32>
    %136 = tpu.matmul %126, %135, %cst_59 {dimension_numbers = #tpu.dot_dimension_numbers<[1], [0], [0], [1], [0, 0, 1, 1], [], []>} : vector<8x8xf32>, vector<8x32xf32>, vector<8x32xf32> -> vector<8x32xf32>
    %137 = vector.extract_strided_slice %101 {offsets = [0, 1], sizes = [8, 1], strides = [1, 1]} : vector<8x2xf32> to vector<8x1xf32>
    %138 = vector.extract_strided_slice %100 {offsets = [1, 0], sizes = [1, 8], strides = [1, 1]} : vector<2x8xf32> to vector<1x8xf32>
    %139 = vector.broadcast %137 : vector<8x1xf32> to vector<8x8xf32>
    %140 = vector.broadcast %138 : vector<1x8xf32> to vector<8x8xf32>
    %141 = arith.addf %139, %140 : vector<8x8xf32>
    %cst_60 = arith.constant 2.000000e-01 : f32
    %142 = vector.broadcast %cst_60 : f32 to vector<8x8xf32>
    %143 = arith.mulf %142, %141 : vector<8x8xf32>
    %144 = arith.maximumf %141, %143 : vector<8x8xf32>
    %145 = arith.addf %144, %11 : vector<8x8xf32>
    %cst_61 = arith.constant dense<0xFF800000> : vector<8xf32>
    %146 = vector.multi_reduction <maximumf>, %145, %cst_61 [1] : vector<8x8xf32> to vector<8xf32>
    %147 = vector.shape_cast %146 : vector<8xf32> to vector<8x1xf32>
    %148 = vector.broadcast %147 : vector<8x1xf32> to vector<8x8xf32>
    %149 = arith.subf %145, %148 : vector<8x8xf32>
    %150 = math.exp %149 : vector<8x8xf32>
    %151 = arith.mulf %150, %9 : vector<8x8xf32>
    %cst_62 = arith.constant dense<0.000000e+00> : vector<8xf32>
    %152 = vector.multi_reduction <add>, %151, %cst_62 [1] : vector<8x8xf32> to vector<8xf32>
    %153 = vector.shape_cast %152 : vector<8xf32> to vector<8x1xf32>
    %cst_63 = arith.constant 0.000000e+00 : f32
    %154 = vector.broadcast %cst_63 : f32 to vector<8x1xf32>
    %155 = arith.cmpf ogt, %153, %154 : vector<8x1xf32>
    %cst_64 = arith.constant 1.000000e+00 : f32
    %156 = vector.broadcast %cst_64 : f32 to vector<8x1xf32>
    %157 = arith.select %155, %153, %156 : vector<8x1xi1>, vector<8x1xf32>
    %158 = tpu.reciprocal %157 {approx = true} : vector<8x1xf32> -> vector<8x1xf32>
    %159 = vector.broadcast %158 : vector<8x1xf32> to vector<8x8xf32>
    %160 = arith.mulf %151, %159 : vector<8x8xf32>
    %c16_i32_65 = arith.constant 16 : i32
    %161 = vector.broadcast %c16_i32_65 : i32 to vector<1x32xi32>
    %162 = arith.cmpi sge, %102, %161 : vector<1x32xi32>
    %c32_i32_66 = arith.constant 32 : i32
    %163 = vector.broadcast %c32_i32_66 : i32 to vector<1x32xi32>
    %164 = arith.cmpi slt, %102, %163 : vector<1x32xi32>
    %165 = arith.andi %162, %164 : vector<1x32xi1>
    %166 = arith.extui %165 : vector<1x32xi1> to vector<1x32xi32>
    %167 = arith.sitofp %166 : vector<1x32xi32> to vector<1x32xf32>
    %168 = vector.broadcast %167 : vector<1x32xf32> to vector<8x32xf32>
    %169 = arith.mulf %21, %168 : vector<8x32xf32>
    %cst_67 = arith.constant dense<0.000000e+00> : vector<8x32xf32>
    %170 = tpu.matmul %160, %169, %cst_67 {dimension_numbers = #tpu.dot_dimension_numbers<[1], [0], [0], [1], [0, 0, 1, 1], [], []>} : vector<8x8xf32>, vector<8x32xf32>, vector<8x32xf32> -> vector<8x32xf32>
    %171 = arith.addf %136, %170 : vector<8x32xf32>
    %cst_68 = arith.constant 0.000000e+00 : f32
    %172 = vector.broadcast %cst_68 : f32 to vector<8x32xf32>
    %173 = arith.maximumf %171, %172 : vector<8x32xf32>
    %c0_69 = arith.constant 0 : index
    %c0_70 = arith.constant 0 : index
    %174 = vector.load %arg15[%c0_69, %c0_70] : memref<32x32xf32, #tpu.memory_space<vmem>>, vector<32x32xf32>
    %cst_71 = arith.constant dense<0.000000e+00> : vector<8x32xf32>
    %175 = tpu.matmul %173, %174, %cst_71 {dimension_numbers = #tpu.dot_dimension_numbers<[1], [0], [0], [1], [0, 0, 1, 1], [], []>} : vector<8x32xf32>, vector<32x32xf32>, vector<8x32xf32> -> vector<8x32xf32>
    %c0_72 = arith.constant 0 : index
    %c0_73 = arith.constant 0 : index
    %176 = vector.load %arg16[%c0_72, %c0_73] : memref<1x32xf32, #tpu.memory_space<vmem>>, vector<1x32xf32>
    %177 = vector.broadcast %176 : vector<1x32xf32> to vector<8x32xf32>
    %178 = arith.addf %175, %177 : vector<8x32xf32>
    %c0_74 = arith.constant 0 : index
    %c0_75 = arith.constant 0 : index
    %179 = vector.load %arg17[%c0_74, %c0_75] : memref<32x32xf32, #tpu.memory_space<vmem>>, vector<32x32xf32>
    %cst_76 = arith.constant dense<0.000000e+00> : vector<8x32xf32>
    %180 = tpu.matmul %97, %179, %cst_76 {dimension_numbers = #tpu.dot_dimension_numbers<[1], [0], [0], [1], [0, 0, 1, 1], [], []>} : vector<8x32xf32>, vector<32x32xf32>, vector<8x32xf32> -> vector<8x32xf32>
    %c0_77 = arith.constant 0 : index
    %c0_78 = arith.constant 0 : index
    %181 = vector.load %arg18[%c0_77, %c0_78] : memref<1x32xf32, #tpu.memory_space<vmem>>, vector<1x32xf32>
    %182 = vector.broadcast %181 : vector<1x32xf32> to vector<8x32xf32>
    %183 = arith.addf %180, %182 : vector<8x32xf32>
    %c0_79 = arith.constant 0 : index
    %c0_80 = arith.constant 0 : index
    %184 = vector.load %arg19[%c0_79, %c0_80] : memref<32x2xf32, #tpu.memory_space<vmem>>, vector<32x2xf32>
    %c0_81 = arith.constant 0 : index
    %c0_82 = arith.constant 0 : index
    %185 = vector.load %arg20[%c0_81, %c0_82] : memref<32x2xf32, #tpu.memory_space<vmem>>, vector<32x2xf32>
    %cst_83 = arith.constant dense<0.000000e+00> : vector<2x8xf32>
    %186 = tpu.matmul %184, %183, %cst_83 {dimension_numbers = #tpu.dot_dimension_numbers<[0], [1], [1], [0], [0, 1, 1, 0], [], []>} : vector<32x2xf32>, vector<8x32xf32>, vector<2x8xf32> -> vector<2x8xf32>
    %cst_84 = arith.constant dense<0.000000e+00> : vector<8x2xf32>
    %187 = tpu.matmul %178, %185, %cst_84 {dimension_numbers = #tpu.dot_dimension_numbers<[1], [0], [0], [1], [0, 0, 1, 1], [], []>} : vector<8x32xf32>, vector<32x2xf32>, vector<8x2xf32> -> vector<8x2xf32>
    %188 = tpu.iota {dimensions = array<i32: 1>} : vector<1x32xi32>
    %189 = vector.extract_strided_slice %187 {offsets = [0, 0], sizes = [8, 1], strides = [1, 1]} : vector<8x2xf32> to vector<8x1xf32>
    %190 = vector.extract_strided_slice %186 {offsets = [0, 0], sizes = [1, 8], strides = [1, 1]} : vector<2x8xf32> to vector<1x8xf32>
    %191 = vector.broadcast %189 : vector<8x1xf32> to vector<8x8xf32>
    %192 = vector.broadcast %190 : vector<1x8xf32> to vector<8x8xf32>
    %193 = arith.addf %191, %192 : vector<8x8xf32>
    %cst_85 = arith.constant 2.000000e-01 : f32
    %194 = vector.broadcast %cst_85 : f32 to vector<8x8xf32>
    %195 = arith.mulf %194, %193 : vector<8x8xf32>
    %196 = arith.maximumf %193, %195 : vector<8x8xf32>
    %197 = arith.addf %196, %11 : vector<8x8xf32>
    %cst_86 = arith.constant dense<0xFF800000> : vector<8xf32>
    %198 = vector.multi_reduction <maximumf>, %197, %cst_86 [1] : vector<8x8xf32> to vector<8xf32>
    %199 = vector.shape_cast %198 : vector<8xf32> to vector<8x1xf32>
    %200 = vector.broadcast %199 : vector<8x1xf32> to vector<8x8xf32>
    %201 = arith.subf %197, %200 : vector<8x8xf32>
    %202 = math.exp %201 : vector<8x8xf32>
    %203 = arith.mulf %202, %9 : vector<8x8xf32>
    %cst_87 = arith.constant dense<0.000000e+00> : vector<8xf32>
    %204 = vector.multi_reduction <add>, %203, %cst_87 [1] : vector<8x8xf32> to vector<8xf32>
    %205 = vector.shape_cast %204 : vector<8xf32> to vector<8x1xf32>
    %cst_88 = arith.constant 0.000000e+00 : f32
    %206 = vector.broadcast %cst_88 : f32 to vector<8x1xf32>
    %207 = arith.cmpf ogt, %205, %206 : vector<8x1xf32>
    %cst_89 = arith.constant 1.000000e+00 : f32
    %208 = vector.broadcast %cst_89 : f32 to vector<8x1xf32>
    %209 = arith.select %207, %205, %208 : vector<8x1xi1>, vector<8x1xf32>
    %210 = tpu.reciprocal %209 {approx = true} : vector<8x1xf32> -> vector<8x1xf32>
    %211 = vector.broadcast %210 : vector<8x1xf32> to vector<8x8xf32>
    %212 = arith.mulf %203, %211 : vector<8x8xf32>
    %c0_i32_90 = arith.constant 0 : i32
    %213 = vector.broadcast %c0_i32_90 : i32 to vector<1x32xi32>
    %214 = arith.cmpi sge, %188, %213 : vector<1x32xi32>
    %c16_i32_91 = arith.constant 16 : i32
    %215 = vector.broadcast %c16_i32_91 : i32 to vector<1x32xi32>
    %216 = arith.cmpi slt, %188, %215 : vector<1x32xi32>
    %217 = arith.andi %214, %216 : vector<1x32xi1>
    %218 = arith.extui %217 : vector<1x32xi1> to vector<1x32xi32>
    %219 = arith.sitofp %218 : vector<1x32xi32> to vector<1x32xf32>
    %220 = vector.broadcast %219 : vector<1x32xf32> to vector<8x32xf32>
    %221 = arith.mulf %183, %220 : vector<8x32xf32>
    %cst_92 = arith.constant dense<0.000000e+00> : vector<8x32xf32>
    %222 = tpu.matmul %212, %221, %cst_92 {dimension_numbers = #tpu.dot_dimension_numbers<[1], [0], [0], [1], [0, 0, 1, 1], [], []>} : vector<8x8xf32>, vector<8x32xf32>, vector<8x32xf32> -> vector<8x32xf32>
    %223 = vector.extract_strided_slice %187 {offsets = [0, 1], sizes = [8, 1], strides = [1, 1]} : vector<8x2xf32> to vector<8x1xf32>
    %224 = vector.extract_strided_slice %186 {offsets = [1, 0], sizes = [1, 8], strides = [1, 1]} : vector<2x8xf32> to vector<1x8xf32>
    %225 = vector.broadcast %223 : vector<8x1xf32> to vector<8x8xf32>
    %226 = vector.broadcast %224 : vector<1x8xf32> to vector<8x8xf32>
    %227 = arith.addf %225, %226 : vector<8x8xf32>
    %cst_93 = arith.constant 2.000000e-01 : f32
    %228 = vector.broadcast %cst_93 : f32 to vector<8x8xf32>
    %229 = arith.mulf %228, %227 : vector<8x8xf32>
    %230 = arith.maximumf %227, %229 : vector<8x8xf32>
    %231 = arith.addf %230, %11 : vector<8x8xf32>
    %cst_94 = arith.constant dense<0xFF800000> : vector<8xf32>
    %232 = vector.multi_reduction <maximumf>, %231, %cst_94 [1] : vector<8x8xf32> to vector<8xf32>
    %233 = vector.shape_cast %232 : vector<8xf32> to vector<8x1xf32>
    %234 = vector.broadcast %233 : vector<8x1xf32> to vector<8x8xf32>
    %235 = arith.subf %231, %234 : vector<8x8xf32>
    %236 = math.exp %235 : vector<8x8xf32>
    %237 = arith.mulf %236, %9 : vector<8x8xf32>
    %cst_95 = arith.constant dense<0.000000e+00> : vector<8xf32>
    %238 = vector.multi_reduction <add>, %237, %cst_95 [1] : vector<8x8xf32> to vector<8xf32>
    %239 = vector.shape_cast %238 : vector<8xf32> to vector<8x1xf32>
    %cst_96 = arith.constant 0.000000e+00 : f32
    %240 = vector.broadcast %cst_96 : f32 to vector<8x1xf32>
    %241 = arith.cmpf ogt, %239, %240 : vector<8x1xf32>
    %cst_97 = arith.constant 1.000000e+00 : f32
    %242 = vector.broadcast %cst_97 : f32 to vector<8x1xf32>
    %243 = arith.select %241, %239, %242 : vector<8x1xi1>, vector<8x1xf32>
    %244 = tpu.reciprocal %243 {approx = true} : vector<8x1xf32> -> vector<8x1xf32>
    %245 = vector.broadcast %244 : vector<8x1xf32> to vector<8x8xf32>
    %246 = arith.mulf %237, %245 : vector<8x8xf32>
    %c16_i32_98 = arith.constant 16 : i32
    %247 = vector.broadcast %c16_i32_98 : i32 to vector<1x32xi32>
    %248 = arith.cmpi sge, %188, %247 : vector<1x32xi32>
    %c32_i32_99 = arith.constant 32 : i32
    %249 = vector.broadcast %c32_i32_99 : i32 to vector<1x32xi32>
    %250 = arith.cmpi slt, %188, %249 : vector<1x32xi32>
    %251 = arith.andi %248, %250 : vector<1x32xi1>
    %252 = arith.extui %251 : vector<1x32xi1> to vector<1x32xi32>
    %253 = arith.sitofp %252 : vector<1x32xi32> to vector<1x32xf32>
    %254 = vector.broadcast %253 : vector<1x32xf32> to vector<8x32xf32>
    %255 = arith.mulf %183, %254 : vector<8x32xf32>
    %cst_100 = arith.constant dense<0.000000e+00> : vector<8x32xf32>
    %256 = tpu.matmul %246, %255, %cst_100 {dimension_numbers = #tpu.dot_dimension_numbers<[1], [0], [0], [1], [0, 0, 1, 1], [], []>} : vector<8x8xf32>, vector<8x32xf32>, vector<8x32xf32> -> vector<8x32xf32>
    %257 = arith.addf %222, %256 : vector<8x32xf32>
    %cst_101 = arith.constant 0.000000e+00 : f32
    %258 = vector.broadcast %cst_101 : f32 to vector<8x32xf32>
    %259 = arith.maximumf %257, %258 : vector<8x32xf32>
    %260 = arith.addf %259, %173 : vector<8x32xf32>
    %c0_102 = arith.constant 0 : index
    %c0_103 = arith.constant 0 : index
    %261 = vector.load %arg21[%c0_102, %c0_103] : memref<32x128xf32, #tpu.memory_space<vmem>>, vector<32x128xf32>
    %cst_104 = arith.constant dense<0.000000e+00> : vector<8x128xf32>
    %262 = tpu.matmul %260, %261, %cst_104 {dimension_numbers = #tpu.dot_dimension_numbers<[1], [0], [0], [1], [0, 0, 1, 1], [], []>} : vector<8x32xf32>, vector<32x128xf32>, vector<8x128xf32> -> vector<8x128xf32>
    %c0_105 = arith.constant 0 : index
    %c0_106 = arith.constant 0 : index
    %263 = vector.load %arg22[%c0_105, %c0_106] : memref<1x128xf32, #tpu.memory_space<vmem>>, vector<1x128xf32>
    %264 = vector.broadcast %263 : vector<1x128xf32> to vector<8x128xf32>
    %265 = arith.addf %262, %264 : vector<8x128xf32>
    %266 = arith.negf %265 : vector<8x128xf32>
    %267 = math.exp %266 : vector<8x128xf32>
    %cst_107 = arith.constant 1.000000e+00 : f32
    %268 = vector.broadcast %cst_107 : f32 to vector<8x128xf32>
    %269 = arith.addf %268, %267 : vector<8x128xf32>
    %270 = arith.divf %268, %269 : vector<8x128xf32>
    %c0_108 = arith.constant 0 : index
    %c0_109 = arith.constant 0 : index
    %c0_110 = arith.constant 0 : index
    %271 = vector.load %arg23[%c0_108, %c0_109, %c0_110] : memref<1x8x128xf32, #tpu.memory_space<vmem>>, vector<1x8x128xf32>
    %272 = vector.shape_cast %271 : vector<1x8x128xf32> to vector<8x128xf32>
    %273 = vector.shape_cast %270 : vector<8x128xf32> to vector<1x8x128xf32>
    tpu.vector_store %arg23[%c0_108, %c0_109, %c0_110], %273 {strides = array<i32>} : memref<1x8x128xf32, #tpu.memory_space<vmem>>, vector<1x8x128xf32>,
    return
  }
  func.func @transform_0(%arg0: i32) -> (i32, i32, i32) {
    %c0_i32 = arith.constant 0 : i32
    %c0_i32_0 = arith.constant 0 : i32
    %c0_i32_1 = arith.constant 0 : i32
    return %arg0, %c0_i32, %c0_i32_0 : i32, i32, i32
  }
  func.func @transform_1(%arg0: i32) -> (i32, i32, i32) {
    %c0_i32 = arith.constant 0 : i32
    %c0_i32_0 = arith.constant 0 : i32
    %c0_i32_1 = arith.constant 0 : i32
    return %arg0, %c0_i32, %c0_i32_0 : i32, i32, i32
  }
  func.func @transform_2(%arg0: i32) -> (i32, i32, i32) {
    %c0_i32 = arith.constant 0 : i32
    %c0_i32_0 = arith.constant 0 : i32
    %c0_i32_1 = arith.constant 0 : i32
    return %arg0, %c0_i32, %c0_i32_0 : i32, i32, i32
  }
  func.func @transform_3(%arg0: i32) -> (i32, i32, i32) {
    %c0_i32 = arith.constant 0 : i32
    %c0_i32_0 = arith.constant 0 : i32
    %c0_i32_1 = arith.constant 0 : i32
    return %arg0, %c0_i32, %c0_i32_0 : i32, i32, i32
  }
  func.func @transform_4(%arg0: i32) -> (i32, i32, i32) {
    %c0_i32 = arith.constant 0 : i32
    %c0_i32_0 = arith.constant 0 : i32
    %c0_i32_1 = arith.constant 0 : i32
    return %arg0, %c0_i32, %c0_i32_0 : i32, i32, i32
  }
  func.func @transform_5(%arg0: i32) -> (i32, i32, i32) {
    %c0_i32 = arith.constant 0 : i32
    %c0_i32_0 = arith.constant 0 : i32
    %c0_i32_1 = arith.constant 0 : i32
    return %arg0, %c0_i32, %c0_i32_0 : i32, i32, i32
  }
  func.func @transform_6(%arg0: i32) -> (i32, i32) {
    %c0_i32 = arith.constant 0 : i32
    %c0_i32_0 = arith.constant 0 : i32
    %c0_i32_1 = arith.constant 0 : i32
    return %c0_i32, %c0_i32_0 : i32, i32
  }
  func.func @transform_7(%arg0: i32) -> (i32, i32) {
    %c0_i32 = arith.constant 0 : i32
    %c0_i32_0 = arith.constant 0 : i32
    %c0_i32_1 = arith.constant 0 : i32
    return %c0_i32, %c0_i32_0 : i32, i32
  }
  func.func @transform_8(%arg0: i32) -> (i32, i32) {
    %c0_i32 = arith.constant 0 : i32
    %c0_i32_0 = arith.constant 0 : i32
    %c0_i32_1 = arith.constant 0 : i32
    return %c0_i32, %c0_i32_0 : i32, i32
  }
  func.func @transform_9(%arg0: i32) -> (i32, i32) {
    %c0_i32 = arith.constant 0 : i32
    %c0_i32_0 = arith.constant 0 : i32
    %c0_i32_1 = arith.constant 0 : i32
    return %c0_i32, %c0_i32_0 : i32, i32
  }
  func.func @transform_10(%arg0: i32) -> (i32, i32) {
    %c0_i32 = arith.constant 0 : i32
    %c0_i32_0 = arith.constant 0 : i32
    %c0_i32_1 = arith.constant 0 : i32
    return %c0_i32, %c0_i32_0 : i32, i32
  }
  func.func @transform_11(%arg0: i32) -> (i32, i32) {
    %c0_i32 = arith.constant 0 : i32
    %c0_i32_0 = arith.constant 0 : i32
    %c0_i32_1 = arith.constant 0 : i32
    return %c0_i32, %c0_i32_0 : i32, i32
  }
  func.func @transform_12(%arg0: i32) -> (i32, i32) {
    %c0_i32 = arith.constant 0 : i32
    %c0_i32_0 = arith.constant 0 : i32
    %c0_i32_1 = arith.constant 0 : i32
    return %c0_i32, %c0_i32_0 : i32, i32
  }
  func.func @transform_13(%arg0: i32) -> (i32, i32) {
    %c0_i32 = arith.constant 0 : i32
    %c0_i32_0 = arith.constant 0 : i32
    %c0_i32_1 = arith.constant 0 : i32
    return %c0_i32, %c0_i32_0 : i32, i32
  }
  func.func @transform_14(%arg0: i32) -> (i32, i32) {
    %c0_i32 = arith.constant 0 : i32
    %c0_i32_0 = arith.constant 0 : i32
    %c0_i32_1 = arith.constant 0 : i32
    return %c0_i32, %c0_i32_0 : i32, i32
  }
  func.func @transform_15(%arg0: i32) -> (i32, i32) {
    %c0_i32 = arith.constant 0 : i32
    %c0_i32_0 = arith.constant 0 : i32
    %c0_i32_1 = arith.constant 0 : i32
    return %c0_i32, %c0_i32_0 : i32, i32
  }
  func.func @transform_16(%arg0: i32) -> (i32, i32) {
    %c0_i32 = arith.constant 0 : i32
    %c0_i32_0 = arith.constant 0 : i32
    %c0_i32_1 = arith.constant 0 : i32
    return %c0_i32, %c0_i32_0 : i32, i32
  }
  func.func @transform_17(%arg0: i32) -> (i32, i32) {
    %c0_i32 = arith.constant 0 : i32
    %c0_i32_0 = arith.constant 0 : i32
    %c0_i32_1 = arith.constant 0 : i32
    return %c0_i32, %c0_i32_0 : i32, i32
  }
  func.func @transform_18(%arg0: i32) -> (i32, i32) {
    %c0_i32 = arith.constant 0 : i32
    %c0_i32_0 = arith.constant 0 : i32
    %c0_i32_1 = arith.constant 0 : i32
    return %c0_i32, %c0_i32_0 : i32, i32
  }
  func.func @transform_19(%arg0: i32) -> (i32, i32) {
    %c0_i32 = arith.constant 0 : i32
    %c0_i32_0 = arith.constant 0 : i32
    %c0_i32_1 = arith.constant 0 : i32
    return %c0_i32, %c0_i32_0 : i32, i32
  }
  func.func @transform_20(%arg0: i32) -> (i32, i32) {
    %c0_i32 = arith.constant 0 : i32
    %c0_i32_0 = arith.constant 0 : i32
    %c0_i32_1 = arith.constant 0 : i32
    return %c0_i32, %c0_i32_0 : i32, i32
  }
  func.func @transform_21(%arg0: i32) -> (i32, i32) {
    %c0_i32 = arith.constant 0 : i32
    %c0_i32_0 = arith.constant 0 : i32
    %c0_i32_1 = arith.constant 0 : i32
    return %c0_i32, %c0_i32_0 : i32, i32
  }
  func.func @transform_22(%arg0: i32) -> (i32, i32, i32) {
    %c0_i32 = arith.constant 0 : i32
    %c0_i32_0 = arith.constant 0 : i32
    %c0_i32_1 = arith.constant 0 : i32
    return %arg0, %c0_i32, %c0_i32_0 : i32, i32, i32
  }
}

</mosaic_0001>

<llo_original>
// kernel: tpu_custom_call.1
$region0: #{tpu_custom_call.1}
  #allocation0 [shape = 'u32[]', space=smem, size = 0x4, offset = 0x4, fixed_abs, tag = 'smem constant byte address 0x4 - core index']
  #allocation1 [shape = 'u32[72,128]{1,0:T(1,128)}', space=vmem, size = 0x9000, scoped, tag = 'internal scratch']
  %s0 = inlined_call_operand.vmem [shape: f32[4,8,16], index: 0, kind: input, shape index: {}]
  %s1 = inlined_call_operand.vmem [shape: f32[4,8,16], index: 1, kind: input, shape index: {}]
  %s2 = inlined_call_operand.vmem [shape: f32[4,8,8], index: 2, kind: input, shape index: {}]
  %s3 = inlined_call_operand.vmem [shape: f32[4,8,8], index: 3, kind: input, shape index: {}]
  %s4 = inlined_call_operand.vmem [shape: f32[4,8,8], index: 4, kind: input, shape index: {}]
  %s5 = inlined_call_operand.vmem [shape: f32[4,8,8], index: 5, kind: input, shape index: {}]
  %s6 = inlined_call_operand.hbm [shape: f32[16,32], index: 6, kind: input, shape index: {}]
  %s7 = inlined_call_operand.vmem [shape: f32[1,32], index: 7, kind: input, shape index: {}]
  %s8 = inlined_call_operand.hbm [shape: f32[16,32], index: 8, kind: input, shape index: {}]
  %s9 = inlined_call_operand.vmem [shape: f32[1,32], index: 9, kind: input, shape index: {}]
  %s10 = inlined_call_operand.vmem [shape: f32[32,2], index: 10, kind: input, shape index: {}]
  %s11 = inlined_call_operand.vmem [shape: f32[32,2], index: 11, kind: input, shape index: {}]
  %s12 = inlined_call_operand.vmem [shape: f32[32,2], index: 12, kind: input, shape index: {}]
  %s13 = inlined_call_operand.vmem [shape: f32[32,2], index: 13, kind: input, shape index: {}]
  %s14 = inlined_call_operand.hbm [shape: f32[32,32], index: 14, kind: input, shape index: {}]
  %s15 = inlined_call_operand.vmem [shape: f32[1,32], index: 15, kind: input, shape index: {}]
  %s16 = inlined_call_operand.hbm [shape: f32[32,32], index: 16, kind: input, shape index: {}]
  %s17 = inlined_call_operand.vmem [shape: f32[1,32], index: 17, kind: input, shape index: {}]
  %s18 = inlined_call_operand.vmem [shape: f32[32,2], index: 18, kind: input, shape index: {}]
  %s19 = inlined_call_operand.vmem [shape: f32[32,2], index: 19, kind: input, shape index: {}]
  %s20 = inlined_call_operand.hbm [shape: f32[32,128], index: 20, kind: input, shape index: {}]
  %s21 = inlined_call_operand.vmem [shape: f32[1,128], index: 21, kind: input, shape index: {}]
  %s22 = inlined_call_operand.hbm [shape: f32[4,8,128], index: 22, kind: output, shape index: {}]
  %s23 = sld [smem:[#allocation0]]
  $region141: #{tpu_custom_call.1} parent=0
    _
  %s25 = ssub.s32 1, %s23
  %s26 = scalar_select 0, %s25, %s23
  $region1: #{tpu_custom_call.1} parent=0
    #allocation2 [shape = 'u8[8192]{0}', space=vmem, size = 0x2000, scoped, tag = 'input window, operand 6, single buffered']
    #allocation3 [shape = 's32[2]{0}', space=sflag, size = 0x8, scoped, tag = 'scoped memory for tpu_custom_call.1']
    #allocation4 [shape = 's32[2]{0}', space=sflag, size = 0x8, scoped, tag = 'scoped memory for tpu_custom_call.1']
    #allocation5 [shape = 'u8[8192]{0}', space=vmem, size = 0x2000, scoped, tag = 'input window, operand 8, single buffered']
    #allocation6 [shape = 's32[1]{0}', space=sflag, size = 0x4, scoped, tag = 'scoped memory for tpu_custom_call.1']
    #allocation7 [shape = 'u8[16384]{0}', space=vmem, size = 0x4000, scoped, tag = 'input window, operand 14, single buffered']
    #allocation8 [shape = 'u8[16384]{0}', space=vmem, size = 0x4000, scoped, tag = 'input window, operand 16, single buffered']
    #allocation9 [shape = 's32[1]{0}', space=sflag, size = 0x4, scoped, tag = 'scoped memory for tpu_custom_call.1']
    #allocation10 [shape = 'u8[16384]{0}', space=vmem, size = 0x4000, scoped, tag = 'input window, operand 20, single buffered']
    #allocation11 [shape = 'u8[8192]{0}', space=vmem, size = 0x2000, scoped, tag = 'output window, operand 0']
    %27 = vsyncpa [#allocation3], 0
    %28 = vsyncpa [#allocation6], 0
    %29 = vsyncpa [#allocation9], 0
    %30 = vsyncpa [#allocation4], 0
    %s31 = scalar_lea.sflag [#allocation4], 1
    %32 = vsyncpa %s31, 0
    loop: start=0, step=1, limit=6
    $region2: #{tpu_custom_call.1} parent=1 // loop_pre_header
      _
    $region3: #{tpu_custom_call.1} parent=1 // loop_header
      %s34 = sphi 0, %s38
      %p35 = scmp.ge.s32.totalorder %s34, 6
      %s44 = sphi 0, %s46
      %s47 = sphi 0, %s44
      %s48 = sphi 0, %s47
      %s64 = sphi 0, %s48
      %s70 = sphi 0, %s72
      %s73 = sphi 0, %s70
      %s74 = sphi 0, %s73
      %s90 = sphi 0, %s74
      %s96 = sphi 0, %s98
      %s99 = sphi 0, %s96
      %s100 = sphi 0, %s99
      %s116 = sphi 0, %s100
      %s122 = sphi 0, %s124
      %s125 = sphi 0, %s122
      %s126 = sphi 0, %s125
      %s142 = sphi 0, %s126
      %s148 = sphi 0, %s150
      %s151 = sphi 0, %s148
      %s152 = sphi 0, %s151
      %s168 = sphi 0, %s152
      %s174 = sphi 0, %s176
      %s177 = sphi 0, %s174
      %s178 = sphi 0, %s177
      %s194 = sphi 0, %s178
      %s198 = sphi 0, %s198
      %s200 = sphi 0, %s198
      %s201 = sphi 0, %s200
      %s215 = sphi 0, %s201
      %s219 = sphi 0, %s219
      %s221 = sphi 0, %s219
      %s222 = sphi 0, %s221
      %s236 = sphi 0, %s222
      %s240 = sphi 0, %s240
      %s242 = sphi 0, %s240
      %s243 = sphi 0, %s242
      %s257 = sphi 0, %s243
      %s261 = sphi 0, %s261
      %s263 = sphi 0, %s261
      %s264 = sphi 0, %s263
      %s278 = sphi 0, %s264
      %s282 = sphi 0, %s282
      %s284 = sphi 0, %s282
      %s285 = sphi 0, %s284
      %s299 = sphi 0, %s285
      %s303 = sphi 0, %s303
      %s305 = sphi 0, %s303
      %s306 = sphi 0, %s305
      %s320 = sphi 0, %s306
      %s324 = sphi 0, %s324
      %s326 = sphi 0, %s324
      %s327 = sphi 0, %s326
      %s341 = sphi 0, %s327
      %s345 = sphi 0, %s345
      %s347 = sphi 0, %s345
      %s348 = sphi 0, %s347
      %s362 = sphi 0, %s348
      %s366 = sphi 0, %s366
      %s368 = sphi 0, %s366
      %s369 = sphi 0, %s368
      %s383 = sphi 0, %s369
      %s387 = sphi 0, %s387
      %s389 = sphi 0, %s387
      %s390 = sphi 0, %s389
      %s404 = sphi 0, %s390
      %s408 = sphi 0, %s408
      %s410 = sphi 0, %s408
      %s411 = sphi 0, %s410
      %s425 = sphi 0, %s411
      %s429 = sphi 0, %s429
      %s431 = sphi 0, %s429
      %s432 = sphi 0, %s431
      %s446 = sphi 0, %s432
      %s450 = sphi 0, %s450
      %s452 = sphi 0, %s450
      %s453 = sphi 0, %s452
      %s467 = sphi 0, %s453
      %s471 = sphi 0, %s471
      %s473 = sphi 0, %s471
      %s474 = sphi 0, %s473
      %s488 = sphi 0, %s474
      %s492 = sphi 0, %s492
      %s494 = sphi 0, %s492
      %s495 = sphi 0, %s494
      %s509 = sphi 0, %s495
      %s513 = sphi 0, %s513
      %s515 = sphi 0, %s513
      %s516 = sphi 0, %s515
      %s530 = sphi 0, %s516
      %s536 = sphi 0, %s538
      %s539 = sphi 0, %s536
      %s540 = sphi 0, %s539
      %s556 = sphi 0, %s540
    $region4: #{tpu_custom_call.1} parent=1 // loop_header_branch
      %37 = sbr.rel (%p35) target = $region8
    $region5: #{tpu_custom_call.1} parent=1 // loop_body
      %s39 = ssub.s32 %s34, 1
      %s40 = ssub.s32 %s34, 2
      %s41 = sadd.s32 %s34, 1
      %s42 = ssub.s32 %s34, %s41
      %p43 = scmp.eq.s32.totalorder %s42, 0
      %s45 = sadd.s32 %s44, 1
      %s46 = scalar_select %p43, %s44, %s45
      %p49 = pneg %p43
      %p50 = scmp.eq.s32.totalorder %s34, 3
      %p51 = por %p49, %p50
      %p52 = scmp.ne.s32.totalorder %s44, %s47
      %p53 = scmp.eq.s32.totalorder %s34, 0
      %p54 = por %p52, %p53
      %p55 = scmp.ne.s32.totalorder %s44, %s47
      %p56 = scmp.eq.s32.totalorder %s39, 3
      %p57 = por %p55, %p56
      %p58 = scmp.ne.s32.totalorder %s47, %s48
      %p59 = scmp.eq.s32.totalorder %s39, 0
      %p60 = por %p58, %p59
      %p61 = scmp.ne.s32.totalorder %s47, %s48
      %p62 = scmp.eq.s32.totalorder %s40, 3
      %p63 = por %p61, %p62
      %p65 = scmp.ne.s32.totalorder %s48, %s64
      %p66 = scmp.eq.s32.totalorder %s40, 0
      %p67 = por %p65, %p66
      %s68 = ssub.s32 %s34, %s41
      %p69 = scmp.eq.s32.totalorder %s68, 0
      %s71 = sadd.s32 %s70, 1
      %s72 = scalar_select %p69, %s70, %s71
      %p75 = pneg %p69
      %p76 = scmp.eq.s32.totalorder %s34, 3
      %p77 = por %p75, %p76
      %p78 = scmp.ne.s32.totalorder %s70, %s73
      %p79 = scmp.eq.s32.totalorder %s34, 0
      %p80 = por %p78, %p79
      %p81 = scmp.ne.s32.totalorder %s70, %s73
      %p82 = scmp.eq.s32.totalorder %s39, 3
      %p83 = por %p81, %p82
      %p84 = scmp.ne.s32.totalorder %s73, %s74
      %p85 = scmp.eq.s32.totalorder %s39, 0
      %p86 = por %p84, %p85
      %p87 = scmp.ne.s32.totalorder %s73, %s74
      %p88 = scmp.eq.s32.totalorder %s40, 3
      %p89 = por %p87, %p88
      %p91 = scmp.ne.s32.totalorder %s74, %s90
      %p92 = scmp.eq.s32.totalorder %s40, 0
      %p93 = por %p91, %p92
      %s94 = ssub.s32 %s34, %s41
      %p95 = scmp.eq.s32.totalorder %s94, 0
      %s97 = sadd.s32 %s96, 1
      %s98 = scalar_select %p95, %s96, %s97
      %p101 = pneg %p95
      %p102 = scmp.eq.s32.totalorder %s34, 3
      %p103 = por %p101, %p102
      %p104 = scmp.ne.s32.totalorder %s96, %s99
      %p105 = scmp.eq.s32.totalorder %s34, 0
      %p106 = por %p104, %p105
      %p107 = scmp.ne.s32.totalorder %s96, %s99
      %p108 = scmp.eq.s32.totalorder %s39, 3
      %p109 = por %p107, %p108
      %p110 = scmp.ne.s32.totalorder %s99, %s100
      %p111 = scmp.eq.s32.totalorder %s39, 0
      %p112 = por %p110, %p111
      %p113 = scmp.ne.s32.totalorder %s99, %s100
      %p114 = scmp.eq.s32.totalorder %s40, 3
      %p115 = por %p113, %p114
      %p117 = scmp.ne.s32.totalorder %s100, %s116
      %p118 = scmp.eq.s32.totalorder %s40, 0
      %p119 = por %p117, %p118
      %s120 = ssub.s32 %s34, %s41
      %p121 = scmp.eq.s32.totalorder %s120, 0
      %s123 = sadd.s32 %s122, 1
      %s124 = scalar_select %p121, %s122, %s123
      %p127 = pneg %p121
      %p128 = scmp.eq.s32.totalorder %s34, 3
      %p129 = por %p127, %p128
      %p130 = scmp.ne.s32.totalorder %s122, %s125
      %p131 = scmp.eq.s32.totalorder %s34, 0
      %p132 = por %p130, %p131
      %p133 = scmp.ne.s32.totalorder %s122, %s125
      %p134 = scmp.eq.s32.totalorder %s39, 3
      %p135 = por %p133, %p134
      %p136 = scmp.ne.s32.totalorder %s125, %s126
      %p137 = scmp.eq.s32.totalorder %s39, 0
      %p138 = por %p136, %p137
      %p139 = scmp.ne.s32.totalorder %s125, %s126
      %p140 = scmp.eq.s32.totalorder %s40, 3
      %p141 = por %p139, %p140
      %p143 = scmp.ne.s32.totalorder %s126, %s142
      %p144 = scmp.eq.s32.totalorder %s40, 0
      %p145 = por %p143, %p144
      %s146 = ssub.s32 %s34, %s41
      %p147 = scmp.eq.s32.totalorder %s146, 0
      %s149 = sadd.s32 %s148, 1
      %s150 = scalar_select %p147, %s148, %s149
      %p153 = pneg %p147
      %p154 = scmp.eq.s32.totalorder %s34, 3
      %p155 = por %p153, %p154
      %p156 = scmp.ne.s32.totalorder %s148, %s151
      %p157 = scmp.eq.s32.totalorder %s34, 0
      %p158 = por %p156, %p157
      %p159 = scmp.ne.s32.totalorder %s148, %s151
      %p160 = scmp.eq.s32.totalorder %s39, 3
      %p161 = por %p159, %p160
      %p162 = scmp.ne.s32.totalorder %s151, %s152
      %p163 = scmp.eq.s32.totalorder %s39, 0
      %p164 = por %p162, %p163
      %p165 = scmp.ne.s32.totalorder %s151, %s152
      %p166 = scmp.eq.s32.totalorder %s40, 3
      %p167 = por %p165, %p166
      %p169 = scmp.ne.s32.totalorder %s152, %s168
      %p170 = scmp.eq.s32.totalorder %s40, 0
      %p171 = por %p169, %p170
      %s172 = ssub.s32 %s34, %s41
      %p173 = scmp.eq.s32.totalorder %s172, 0
      %s175 = sadd.s32 %s174, 1
      %s176 = scalar_select %p173, %s174, %s175
      %p179 = pneg %p173
      %p180 = scmp.eq.s32.totalorder %s34, 3
      %p181 = por %p179, %p180
      %p182 = scmp.ne.s32.totalorder %s174, %s177
      %p183 = scmp.eq.s32.totalorder %s34, 0
      %p184 = por %p182, %p183
      %p185 = scmp.ne.s32.totalorder %s174, %s177
      %p186 = scmp.eq.s32.totalorder %s39, 3
      %p187 = por %p185, %p186
      %p188 = scmp.ne.s32.totalorder %s177, %s178
      %p189 = scmp.eq.s32.totalorder %s39, 0
      %p190 = por %p188, %p189
      %p191 = scmp.ne.s32.totalorder %s177, %s178
      %p192 = scmp.eq.s32.totalorder %s40, 3
      %p193 = por %p191, %p192
      %p195 = scmp.ne.s32.totalorder %s178, %s194
      %p196 = scmp.eq.s32.totalorder %s40, 0
      %p197 = por %p195, %p196
      %s199 = sadd.s32 %s198, 1
      %p202 = scmp.eq.s32.totalorder %s34, 3
      %p203 = scmp.ne.s32.totalorder %s198, %s200
      %p204 = scmp.eq.s32.totalorder %s34, 0
      %p205 = por %p203, %p204
      %p206 = scmp.ne.s32.totalorder %s198, %s200
      %p207 = scmp.eq.s32.totalorder %s39, 3
      %p208 = por %p206, %p207
      %p209 = scmp.ne.s32.totalorder %s200, %s201
      %p210 = scmp.eq.s32.totalorder %s39, 0
      %p211 = por %p209, %p210
      %p212 = scmp.ne.s32.totalorder %s200, %s201
      %p213 = scmp.eq.s32.totalorder %s40, 3
      %p214 = por %p212, %p213
      %p216 = scmp.ne.s32.totalorder %s201, %s215
      %p217 = scmp.eq.s32.totalorder %s40, 0
      %p218 = por %p216, %p217
      %s220 = sadd.s32 %s219, 1
      %p223 = scmp.eq.s32.totalorder %s34, 3
      %p224 = scmp.ne.s32.totalorder %s219, %s221
      %p225 = scmp.eq.s32.totalorder %s34, 0
      %p226 = por %p224, %p225
      %p227 = scmp.ne.s32.totalorder %s219, %s221
      %p228 = scmp.eq.s32.totalorder %s39, 3
      %p229 = por %p227, %p228
      %p230 = scmp.ne.s32.totalorder %s221, %s222
      %p231 = scmp.eq.s32.totalorder %s39, 0
      %p232 = por %p230, %p231
      %p233 = scmp.ne.s32.totalorder %s221, %s222
      %p234 = scmp.eq.s32.totalorder %s40, 3
      %p235 = por %p233, %p234
      %p237 = scmp.ne.s32.totalorder %s222, %s236
      %p238 = scmp.eq.s32.totalorder %s40, 0
      %p239 = por %p237, %p238
      %s241 = sadd.s32 %s240, 1
      %p244 = scmp.eq.s32.totalorder %s34, 3
      %p245 = scmp.ne.s32.totalorder %s240, %s242
      %p246 = scmp.eq.s32.totalorder %s34, 0
      %p247 = por %p245, %p246
      %p248 = scmp.ne.s32.totalorder %s240, %s242
      %p249 = scmp.eq.s32.totalorder %s39, 3
      %p250 = por %p248, %p249
      %p251 = scmp.ne.s32.totalorder %s242, %s243
      %p252 = scmp.eq.s32.totalorder %s39, 0
      %p253 = por %p251, %p252
      %p254 = scmp.ne.s32.totalorder %s242, %s243
      %p255 = scmp.eq.s32.totalorder %s40, 3
      %p256 = por %p254, %p255
      %p258 = scmp.ne.s32.totalorder %s243, %s257
      %p259 = scmp.eq.s32.totalorder %s40, 0
      %p260 = por %p258, %p259
      %s262 = sadd.s32 %s261, 1
      %p265 = scmp.eq.s32.totalorder %s34, 3
      %p266 = scmp.ne.s32.totalorder %s261, %s263
      %p267 = scmp.eq.s32.totalorder %s34, 0
      %p268 = por %p266, %p267
      %p269 = scmp.ne.s32.totalorder %s261, %s263
      %p270 = scmp.eq.s32.totalorder %s39, 3
      %p271 = por %p269, %p270
      %p272 = scmp.ne.s32.totalorder %s263, %s264
      %p273 = scmp.eq.s32.totalorder %s39, 0
      %p274 = por %p272, %p273
      %p275 = scmp.ne.s32.totalorder %s263, %s264
      %p276 = scmp.eq.s32.totalorder %s40, 3
      %p277 = por %p275, %p276
      %p279 = scmp.ne.s32.totalorder %s264, %s278
      %p280 = scmp.eq.s32.totalorder %s40, 0
      %p281 = por %p279, %p280
      %s283 = sadd.s32 %s282, 1
      %p286 = scmp.eq.s32.totalorder %s34, 3
      %p287 = scmp.ne.s32.totalorder %s282, %s284
      %p288 = scmp.eq.s32.totalorder %s34, 0
      %p289 = por %p287, %p288
      %p290 = scmp.ne.s32.totalorder %s282, %s284
      %p291 = scmp.eq.s32.totalorder %s39, 3
      %p292 = por %p290, %p291
      %p293 = scmp.ne.s32.totalorder %s284, %s285
      %p294 = scmp.eq.s32.totalorder %s39, 0
      %p295 = por %p293, %p294
      %p296 = scmp.ne.s32.totalorder %s284, %s285
      %p297 = scmp.eq.s32.totalorder %s40, 3
      %p298 = por %p296, %p297
      %p300 = scmp.ne.s32.totalorder %s285, %s299
      %p301 = scmp.eq.s32.totalorder %s40, 0
      %p302 = por %p300, %p301
      %s304 = sadd.s32 %s303, 1
      %p307 = scmp.eq.s32.totalorder %s34, 3
      %p308 = scmp.ne.s32.totalorder %s303, %s305
      %p309 = scmp.eq.s32.totalorder %s34, 0
      %p310 = por %p308, %p309
      %p311 = scmp.ne.s32.totalorder %s303, %s305
      %p312 = scmp.eq.s32.totalorder %s39, 3
      %p313 = por %p311, %p312
      %p314 = scmp.ne.s32.totalorder %s305, %s306
      %p315 = scmp.eq.s32.totalorder %s39, 0
      %p316 = por %p314, %p315
      %p317 = scmp.ne.s32.totalorder %s305, %s306
      %p318 = scmp.eq.s32.totalorder %s40, 3
      %p319 = por %p317, %p318
      %p321 = scmp.ne.s32.totalorder %s306, %s320
      %p322 = scmp.eq.s32.totalorder %s40, 0
      %p323 = por %p321, %p322
      %s325 = sadd.s32 %s324, 1
      %p328 = scmp.eq.s32.totalorder %s34, 3
      %p329 = scmp.ne.s32.totalorder %s324, %s326
      %p330 = scmp.eq.s32.totalorder %s34, 0
      %p331 = por %p329, %p330
      %p332 = scmp.ne.s32.totalorder %s324, %s326
      %p333 = scmp.eq.s32.totalorder %s39, 3
      %p334 = por %p332, %p333
      %p335 = scmp.ne.s32.totalorder %s326, %s327
      %p336 = scmp.eq.s32.totalorder %s39, 0
      %p337 = por %p335, %p336
      %p338 = scmp.ne.s32.totalorder %s326, %s327
      %p339 = scmp.eq.s32.totalorder %s40, 3
      %p340 = por %p338, %p339
      %p342 = scmp.ne.s32.totalorder %s327, %s341
      %p343 = scmp.eq.s32.totalorder %s40, 0
      %p344 = por %p342, %p343
      %s346 = sadd.s32 %s345, 1
      %p349 = scmp.eq.s32.totalorder %s34, 3
      %p350 = scmp.ne.s32.totalorder %s345, %s347
      %p351 = scmp.eq.s32.totalorder %s34, 0
      %p352 = por %p350, %p351
      %p353 = scmp.ne.s32.totalorder %s345, %s347
      %p354 = scmp.eq.s32.totalorder %s39, 3
      %p355 = por %p353, %p354
      %p356 = scmp.ne.s32.totalorder %s347, %s348
      %p357 = scmp.eq.s32.totalorder %s39, 0
      %p358 = por %p356, %p357
      %p359 = scmp.ne.s32.totalorder %s347, %s348
      %p360 = scmp.eq.s32.totalorder %s40, 3
      %p361 = por %p359, %p360
      %p363 = scmp.ne.s32.totalorder %s348, %s362
      %p364 = scmp.eq.s32.totalorder %s40, 0
      %p365 = por %p363, %p364
      %s367 = sadd.s32 %s366, 1
      %p370 = scmp.eq.s32.totalorder %s34, 3
      %p371 = scmp.ne.s32.totalorder %s366, %s368
      %p372 = scmp.eq.s32.totalorder %s34, 0
      %p373 = por %p371, %p372
      %p374 = scmp.ne.s32.totalorder %s366, %s368
      %p375 = scmp.eq.s32.totalorder %s39, 3
      %p376 = por %p374, %p375
      %p377 = scmp.ne.s32.totalorder %s368, %s369
      %p378 = scmp.eq.s32.totalorder %s39, 0
      %p379 = por %p377, %p378
      %p380 = scmp.ne.s32.totalorder %s368, %s369
      %p381 = scmp.eq.s32.totalorder %s40, 3
      %p382 = por %p380, %p381
      %p384 = scmp.ne.s32.totalorder %s369, %s383
      %p385 = scmp.eq.s32.totalorder %s40, 0
      %p386 = por %p384, %p385
      %s388 = sadd.s32 %s387, 1
      %p391 = scmp.eq.s32.totalorder %s34, 3
      %p392 = scmp.ne.s32.totalorder %s387, %s389
      %p393 = scmp.eq.s32.totalorder %s34, 0
      %p394 = por %p392, %p393
      %p395 = scmp.ne.s32.totalorder %s387, %s389
      %p396 = scmp.eq.s32.totalorder %s39, 3
      %p397 = por %p395, %p396
      %p398 = scmp.ne.s32.totalorder %s389, %s390
      %p399 = scmp.eq.s32.totalorder %s39, 0
      %p400 = por %p398, %p399
      %p401 = scmp.ne.s32.totalorder %s389, %s390
      %p402 = scmp.eq.s32.totalorder %s40, 3
      %p403 = por %p401, %p402
      %p405 = scmp.ne.s32.totalorder %s390, %s404
      %p406 = scmp.eq.s32.totalorder %s40, 0
      %p407 = por %p405, %p406
      %s409 = sadd.s32 %s408, 1
      %p412 = scmp.eq.s32.totalorder %s34, 3
      %p413 = scmp.ne.s32.totalorder %s408, %s410
      %p414 = scmp.eq.s32.totalorder %s34, 0
      %p415 = por %p413, %p414
      %p416 = scmp.ne.s32.totalorder %s408, %s410
      %p417 = scmp.eq.s32.totalorder %s39, 3
      %p418 = por %p416, %p417
      %p419 = scmp.ne.s32.totalorder %s410, %s411
      %p420 = scmp.eq.s32.totalorder %s39, 0
      %p421 = por %p419, %p420
      %p422 = scmp.ne.s32.totalorder %s410, %s411
      %p423 = scmp.eq.s32.totalorder %s40, 3
      %p424 = por %p422, %p423
      %p426 = scmp.ne.s32.totalorder %s411, %s425
      %p427 = scmp.eq.s32.totalorder %s40, 0
      %p428 = por %p426, %p427
      %s430 = sadd.s32 %s429, 1
      %p433 = scmp.eq.s32.totalorder %s34, 3
      %p434 = scmp.ne.s32.totalorder %s429, %s431
      %p435 = scmp.eq.s32.totalorder %s34, 0
      %p436 = por %p434, %p435
      %p437 = scmp.ne.s32.totalorder %s429, %s431
      %p438 = scmp.eq.s32.totalorder %s39, 3
      %p439 = por %p437, %p438
      %p440 = scmp.ne.s32.totalorder %s431, %s432
      %p441 = scmp.eq.s32.totalorder %s39, 0
      %p442 = por %p440, %p441
      %p443 = scmp.ne.s32.totalorder %s431, %s432
      %p444 = scmp.eq.s32.totalorder %s40, 3
      %p445 = por %p443, %p444
      %p447 = scmp.ne.s32.totalorder %s432, %s446
      %p448 = scmp.eq.s32.totalorder %s40, 0
      %p449 = por %p447, %p448
      %s451 = sadd.s32 %s450, 1
      %p454 = scmp.eq.s32.totalorder %s34, 3
      %p455 = scmp.ne.s32.totalorder %s450, %s452
      %p456 = scmp.eq.s32.totalorder %s34, 0
      %p457 = por %p455, %p456
      %p458 = scmp.ne.s32.totalorder %s450, %s452
      %p459 = scmp.eq.s32.totalorder %s39, 3
      %p460 = por %p458, %p459
      %p461 = scmp.ne.s32.totalorder %s452, %s453
      %p462 = scmp.eq.s32.totalorder %s39, 0
      %p463 = por %p461, %p462
      %p464 = scmp.ne.s32.totalorder %s452, %s453
      %p465 = scmp.eq.s32.totalorder %s40, 3
      %p466 = por %p464, %p465
      %p468 = scmp.ne.s32.totalorder %s453, %s467
      %p469 = scmp.eq.s32.totalorder %s40, 0
      %p470 = por %p468, %p469
      %s472 = sadd.s32 %s471, 1
      %p475 = scmp.eq.s32.totalorder %s34, 3
      %p476 = scmp.ne.s32.totalorder %s471, %s473
      %p477 = scmp.eq.s32.totalorder %s34, 0
      %p478 = por %p476, %p477
      %p479 = scmp.ne.s32.totalorder %s471, %s473
      %p480 = scmp.eq.s32.totalorder %s39, 3
      %p481 = por %p479, %p480
      %p482 = scmp.ne.s32.totalorder %s473, %s474
      %p483 = scmp.eq.s32.totalorder %s39, 0
      %p484 = por %p482, %p483
      %p485 = scmp.ne.s32.totalorder %s473, %s474
      %p486 = scmp.eq.s32.totalorder %s40, 3
      %p487 = por %p485, %p486
      %p489 = scmp.ne.s32.totalorder %s474, %s488
      %p490 = scmp.eq.s32.totalorder %s40, 0
      %p491 = por %p489, %p490
      %s493 = sadd.s32 %s492, 1
      %p496 = scmp.eq.s32.totalorder %s34, 3
      %p497 = scmp.ne.s32.totalorder %s492, %s494
      %p498 = scmp.eq.s32.totalorder %s34, 0
      %p499 = por %p497, %p498
      %p500 = scmp.ne.s32.totalorder %s492, %s494
      %p501 = scmp.eq.s32.totalorder %s39, 3
      %p502 = por %p500, %p501
      %p503 = scmp.ne.s32.totalorder %s494, %s495
      %p504 = scmp.eq.s32.totalorder %s39, 0
      %p505 = por %p503, %p504
      %p506 = scmp.ne.s32.totalorder %s494, %s495
      %p507 = scmp.eq.s32.totalorder %s40, 3
      %p508 = por %p506, %p507
      %p510 = scmp.ne.s32.totalorder %s495, %s509
      %p511 = scmp.eq.s32.totalorder %s40, 0
      %p512 = por %p510, %p511
      %s514 = sadd.s32 %s513, 1
      %p517 = scmp.eq.s32.totalorder %s34, 3
      %p518 = scmp.ne.s32.totalorder %s513, %s515
      %p519 = scmp.eq.s32.totalorder %s34, 0
      %p520 = por %p518, %p519
      %p521 = scmp.ne.s32.totalorder %s513, %s515
      %p522 = scmp.eq.s32.totalorder %s39, 3
      %p523 = por %p521, %p522
      %p524 = scmp.ne.s32.totalorder %s515, %s516
      %p525 = scmp.eq.s32.totalorder %s39, 0
      %p526 = por %p524, %p525
      %p527 = scmp.ne.s32.totalorder %s515, %s516
      %p528 = scmp.eq.s32.totalorder %s40, 3
      %p529 = por %p527, %p528
      %p531 = scmp.ne.s32.totalorder %s516, %s530
      %p532 = scmp.eq.s32.totalorder %s40, 0
      %p533 = por %p531, %p532
      %s534 = ssub.s32 %s34, %s41
      %p535 = scmp.eq.s32.totalorder %s534, 0
      %s537 = sadd.s32 %s536, 1
      %s538 = scalar_select %p535, %s536, %s537
      %p541 = pneg %p535
      %p542 = scmp.eq.s32.totalorder %s34, 3
      %p543 = por %p541, %p542
      %p544 = scmp.ne.s32.totalorder %s536, %s539
      %p545 = scmp.eq.s32.totalorder %s34, 0
      %p546 = por %p544, %p545
      %p547 = scmp.ne.s32.totalorder %s536, %s539
      %p548 = scmp.eq.s32.totalorder %s39, 3
      %p549 = por %p547, %p548
      %p550 = scmp.ne.s32.totalorder %s539, %s540
      %p551 = scmp.eq.s32.totalorder %s39, 0
      %p552 = por %p550, %p551
      %p553 = scmp.ne.s32.totalorder %s539, %s540
      %p554 = scmp.eq.s32.totalorder %s40, 3
      %p555 = por %p553, %p554
      %p557 = scmp.ne.s32.totalorder %s540, %s556
      %p558 = scmp.eq.s32.totalorder %s40, 0
      %p559 = por %p557, %p558
      %p560 = scmp.le.s32.totalorder 1, %s34
      %p561 = scmp.lt.s32.totalorder %s34, 5
      %p562 = pnand %p560, %p561
      %p563 = pneg %p562
      // Predicated region
      $region9: #{tpu_custom_call.1} parent=5 // pred_check
        _
      $region10: #{tpu_custom_call.1} parent=5 // pred_check_branch
        %565 = sbr.rel (%p562) target = $region12
      $region11: #{tpu_custom_call.1} parent=5 // pred_region
        %s566 = ssub.s32 %s34, 1
        // Predicated region
        $region13: #{tpu_custom_call.1} parent=11 // pred_check
          %p567 = pneg %p211
        $region14: #{tpu_custom_call.1} parent=11 // pred_check_branch
          %569 = sbr.rel (%p567) target = $region16
        $region15: #{tpu_custom_call.1} parent=11 // pred_region
          %571 = vsyncadd [#allocation3], 0
          %s572 = sshll.u32 %s6, 4
          %s573 = int_to_ptr.hbm [resolvable:$true] %s572
          %s574 = sshll.u32 [#allocation2], 4
          %s575 = int_to_ptr.vmem [resolvable:$true] %s574
          %580 = dma.hbm_to_vmem [thread:$0]  %s573, 256, %s575, [#allocation3], 128, 128, 8
        $region16: #{tpu_custom_call.1} parent=11 // pred_fallthru
          _
        // Predicated region
        $region17: #{tpu_custom_call.1} parent=11 // pred_check
          %p581 = pneg %p232
        $region18: #{tpu_custom_call.1} parent=11 // pred_check_branch
          %583 = sbr.rel (%p581) target = $region20
        $region19: #{tpu_custom_call.1} parent=11 // pred_region
          _
        $region20: #{tpu_custom_call.1} parent=11 // pred_fallthru
          _
        // Predicated region
        $region21: #{tpu_custom_call.1} parent=11 // pred_check
          %p584 = pneg %p253
        $region22: #{tpu_custom_call.1} parent=11 // pred_check_branch
          %586 = sbr.rel (%p584) target = $region24
        $region23: #{tpu_custom_call.1} parent=11 // pred_region
          %588 = vsyncadd [#allocation6], 0
          %s589 = sshll.u32 %s8, 4
          %s590 = int_to_ptr.hbm [resolvable:$true] %s589
          %s591 = sshll.u32 [#allocation5], 4
          %s592 = int_to_ptr.vmem [resolvable:$true] %s591
          %597 = dma.hbm_to_vmem [thread:$0]  %s590, 256, %s592, [#allocation6], 128, 128, 8
        $region24: #{tpu_custom_call.1} parent=11 // pred_fallthru
          _
        // Predicated region
        $region25: #{tpu_custom_call.1} parent=11 // pred_check
          %p598 = pneg %p274
        $region26: #{tpu_custom_call.1} parent=11 // pred_check_branch
          %600 = sbr.rel (%p598) target = $region28
        $region27: #{tpu_custom_call.1} parent=11 // pred_region
          _
        $region28: #{tpu_custom_call.1} parent=11 // pred_fallthru
          _
        // Predicated region
        $region29: #{tpu_custom_call.1} parent=11 // pred_check
          %p601 = pneg %p295
        $region30: #{tpu_custom_call.1} parent=11 // pred_check_branch
          %603 = sbr.rel (%p601) target = $region32
        $region31: #{tpu_custom_call.1} parent=11 // pred_region
          _
        $region32: #{tpu_custom_call.1} parent=11 // pred_fallthru
          _
        // Predicated region
        $region33: #{tpu_custom_call.1} parent=11 // pred_check
          %p604 = pneg %p316
        $region34: #{tpu_custom_call.1} parent=11 // pred_check_branch
          %606 = sbr.rel (%p604) target = $region36
        $region35: #{tpu_custom_call.1} parent=11 // pred_region
          _
        $region36: #{tpu_custom_call.1} parent=11 // pred_fallthru
          _
        // Predicated region
        $region37: #{tpu_custom_call.1} parent=11 // pred_check
          %p607 = pneg %p337
        $region38: #{tpu_custom_call.1} parent=11 // pred_check_branch
          %609 = sbr.rel (%p607) target = $region40
        $region39: #{tpu_custom_call.1} parent=11 // pred_region
          _
        $region40: #{tpu_custom_call.1} parent=11 // pred_fallthru
          _
        // Predicated region
        $region41: #{tpu_custom_call.1} parent=11 // pred_check
          %p610 = pneg %p358
        $region42: #{tpu_custom_call.1} parent=11 // pred_check_branch
          %612 = sbr.rel (%p610) target = $region44
        $region43: #{tpu_custom_call.1} parent=11 // pred_region
          _
        $region44: #{tpu_custom_call.1} parent=11 // pred_fallthru
          _
        // Predicated region
        $region45: #{tpu_custom_call.1} parent=11 // pred_check
          %p613 = pneg %p379
        $region46: #{tpu_custom_call.1} parent=11 // pred_check_branch
          %615 = sbr.rel (%p613) target = $region48
        $region47: #{tpu_custom_call.1} parent=11 // pred_region
          %617 = vsyncadd [#allocation6], 0
          %s618 = sshll.u32 %s14, 4
          %s619 = int_to_ptr.hbm [resolvable:$true] %s618
          %s620 = sshll.u32 [#allocation7], 4
          %s621 = int_to_ptr.vmem [resolvable:$true] %s620
          %626 = dma.hbm_to_vmem [thread:$0]  %s619, 512, %s621, [#allocation6], 128, 128, 8
        $region48: #{tpu_custom_call.1} parent=11 // pred_fallthru
          _
        // Predicated region
        $region49: #{tpu_custom_call.1} parent=11 // pred_check
          %p627 = pneg %p400
        $region50: #{tpu_custom_call.1} parent=11 // pred_check_branch
          %629 = sbr.rel (%p627) target = $region52
        $region51: #{tpu_custom_call.1} parent=11 // pred_region
          _
        $region52: #{tpu_custom_call.1} parent=11 // pred_fallthru
          _
        // Predicated region
        $region53: #{tpu_custom_call.1} parent=11 // pred_check
          %p630 = pneg %p421
        $region54: #{tpu_custom_call.1} parent=11 // pred_check_branch
          %632 = sbr.rel (%p630) target = $region56
        $region55: #{tpu_custom_call.1} parent=11 // pred_region
          %634 = vsyncadd [#allocation9], 0
          %s635 = sshll.u32 %s16, 4
          %s636 = int_to_ptr.hbm [resolvable:$true] %s635
          %s637 = sshll.u32 [#allocation8], 4
          %s638 = int_to_ptr.vmem [resolvable:$true] %s637
          %643 = dma.hbm_to_vmem [thread:$0]  %s636, 512, %s638, [#allocation9], 128, 128, 8
        $region56: #{tpu_custom_call.1} parent=11 // pred_fallthru
          _
        // Predicated region
        $region57: #{tpu_custom_call.1} parent=11 // pred_check
          %p644 = pneg %p442
        $region58: #{tpu_custom_call.1} parent=11 // pred_check_branch
          %646 = sbr.rel (%p644) target = $region60
        $region59: #{tpu_custom_call.1} parent=11 // pred_region
          _
        $region60: #{tpu_custom_call.1} parent=11 // pred_fallthru
          _
        // Predicated region
        $region61: #{tpu_custom_call.1} parent=11 // pred_check
          %p647 = pneg %p463
        $region62: #{tpu_custom_call.1} parent=11 // pred_check_branch
          %649 = sbr.rel (%p647) target = $region64
        $region63: #{tpu_custom_call.1} parent=11 // pred_region
          _
        $region64: #{tpu_custom_call.1} parent=11 // pred_fallthru
          _
        // Predicated region
        $region65: #{tpu_custom_call.1} parent=11 // pred_check
          %p650 = pneg %p484
        $region66: #{tpu_custom_call.1} parent=11 // pred_check_branch
          %652 = sbr.rel (%p650) target = $region68
        $region67: #{tpu_custom_call.1} parent=11 // pred_region
          _
        $region68: #{tpu_custom_call.1} parent=11 // pred_fallthru
          _
        // Predicated region
        $region69: #{tpu_custom_call.1} parent=11 // pred_check
          %p653 = pneg %p505
        $region70: #{tpu_custom_call.1} parent=11 // pred_check_branch
          %655 = sbr.rel (%p653) target = $region72
        $region71: #{tpu_custom_call.1} parent=11 // pred_region
          %657 = vsyncadd [#allocation9], 0
          %s658 = sshll.u32 %s20, 4
          %s659 = int_to_ptr.hbm [resolvable:$true] %s658
          %s660 = sshll.u32 [#allocation10], 4
          %s661 = int_to_ptr.vmem [resolvable:$true] %s660
          %666 = dma.hbm_to_vmem [thread:$0]  %s659, 512, %s661, [#allocation9], 128, 128, 8
        $region72: #{tpu_custom_call.1} parent=11 // pred_fallthru
          _
        // Predicated region
        $region73: #{tpu_custom_call.1} parent=11 // pred_check
          %p667 = pneg %p526
        $region74: #{tpu_custom_call.1} parent=11 // pred_check_branch
          %669 = sbr.rel (%p667) target = $region76
        $region75: #{tpu_custom_call.1} parent=11 // pred_region
          _
        $region76: #{tpu_custom_call.1} parent=11 // pred_fallthru
          _
      $region12: #{tpu_custom_call.1} parent=5 // pred_fallthru
        _
      %p670 = scmp.lt.s32.totalorder %s34, 4
      // Predicated region
      $region77: #{tpu_custom_call.1} parent=5 // pred_check
        %p671 = pneg %p670
      $region78: #{tpu_custom_call.1} parent=5 // pred_check_branch
        %673 = sbr.rel (%p671) target = $region80
      $region79: #{tpu_custom_call.1} parent=5 // pred_region
        // Predicated region
        $region81: #{tpu_custom_call.1} parent=79 // pred_check
          %p674 = pneg %p54
        $region82: #{tpu_custom_call.1} parent=79 // pred_check_branch
          %676 = sbr.rel (%p674) target = $region84
        $region83: #{tpu_custom_call.1} parent=79 // pred_region
          %p677 = scmp.lt.s32.totalorder %s34, 3
          %s678 = scalar_select %p677, %s34, 3
          %s679 = smul.addr %s678, 8
          %s680 = scalar_lea.vmem %s0, %s679
        $region84: #{tpu_custom_call.1} parent=79 // pred_fallthru
          _
        // Predicated region
        $region85: #{tpu_custom_call.1} parent=79 // pred_check
          %p681 = pneg %p80
        $region86: #{tpu_custom_call.1} parent=79 // pred_check_branch
          %683 = sbr.rel (%p681) target = $region88
        $region87: #{tpu_custom_call.1} parent=79 // pred_region
          %p684 = scmp.lt.s32.totalorder %s34, 3
          %s685 = scalar_select %p684, %s34, 3
          %s686 = smul.addr %s685, 8
          %s687 = scalar_lea.vmem %s1, %s686
        $region88: #{tpu_custom_call.1} parent=79 // pred_fallthru
          _
        // Predicated region
        $region89: #{tpu_custom_call.1} parent=79 // pred_check
          %p688 = pneg %p106
        $region90: #{tpu_custom_call.1} parent=79 // pred_check_branch
          %690 = sbr.rel (%p688) target = $region92
        $region91: #{tpu_custom_call.1} parent=79 // pred_region
          %p691 = scmp.lt.s32.totalorder %s34, 3
          %s692 = scalar_select %p691, %s34, 3
          %s693 = smul.addr %s692, 8
          %s694 = scalar_lea.vmem %s2, %s693
        $region92: #{tpu_custom_call.1} parent=79 // pred_fallthru
          _
        // Predicated region
        $region93: #{tpu_custom_call.1} parent=79 // pred_check
          %p695 = pneg %p132
        $region94: #{tpu_custom_call.1} parent=79 // pred_check_branch
          %697 = sbr.rel (%p695) target = $region96
        $region95: #{tpu_custom_call.1} parent=79 // pred_region
          %p698 = scmp.lt.s32.totalorder %s34, 3
          %s699 = scalar_select %p698, %s34, 3
          %s700 = smul.addr %s699, 8
          %s701 = scalar_lea.vmem %s3, %s700
        $region96: #{tpu_custom_call.1} parent=79 // pred_fallthru
          _
        // Predicated region
        $region97: #{tpu_custom_call.1} parent=79 // pred_check
          %p702 = pneg %p158
        $region98: #{tpu_custom_call.1} parent=79 // pred_check_branch
          %704 = sbr.rel (%p702) target = $region100
        $region99: #{tpu_custom_call.1} parent=79 // pred_region
          %p705 = scmp.lt.s32.totalorder %s34, 3
          %s706 = scalar_select %p705, %s34, 3
          %s707 = smul.addr %s706, 8
          %s708 = scalar_lea.vmem %s4, %s707
        $region100: #{tpu_custom_call.1} parent=79 // pred_fallthru
          _
        // Predicated region
        $region101: #{tpu_custom_call.1} parent=79 // pred_check
          %p709 = pneg %p184
        $region102: #{tpu_custom_call.1} parent=79 // pred_check_branch
          %711 = sbr.rel (%p709) target = $region104
        $region103: #{tpu_custom_call.1} parent=79 // pred_region
          %p712 = scmp.lt.s32.totalorder %s34, 3
          %s713 = scalar_select %p712, %s34, 3
          %s714 = smul.addr %s713, 8
          %s715 = scalar_lea.vmem %s5, %s714
        $region104: #{tpu_custom_call.1} parent=79 // pred_fallthru
          _
      $region80: #{tpu_custom_call.1} parent=5 // pred_fallthru
        _
      %p716 = scmp.le.s32.totalorder 1, %s34
      %p717 = scmp.lt.s32.totalorder %s34, 5
      %p718 = pnand %p716, %p717
      %p719 = pneg %p718
      // Predicated region
      $region105: #{tpu_custom_call.1} parent=5 // pred_check
        _
      $region106: #{tpu_custom_call.1} parent=5 // pred_check_branch
        %721 = sbr.rel (%p718) target = $region108
      $region107: #{tpu_custom_call.1} parent=5 // pred_region
        %s722 = ssub.s32 %s34, 1
        // Predicated region
        $region109: #{tpu_custom_call.1} parent=107 // pred_check
          %p723 = pneg %p211
        $region110: #{tpu_custom_call.1} parent=107 // pred_check_branch
          %725 = sbr.rel (%p723) target = $region112
        $region111: #{tpu_custom_call.1} parent=107 // pred_region
          %727 = dma.done [#allocation3], 256
        $region112: #{tpu_custom_call.1} parent=107 // pred_fallthru
          _
        // Predicated region
        $region113: #{tpu_custom_call.1} parent=107 // pred_check
          %p728 = pneg %p253
        $region114: #{tpu_custom_call.1} parent=107 // pred_check_branch
          %730 = sbr.rel (%p728) target = $region116
        $region115: #{tpu_custom_call.1} parent=107 // pred_region
          %732 = dma.done [#allocation6], 256
        $region116: #{tpu_custom_call.1} parent=107 // pred_fallthru
          _
        // Predicated region
        $region117: #{tpu_custom_call.1} parent=107 // pred_check
          %p733 = pneg %p379
        $region118: #{tpu_custom_call.1} parent=107 // pred_check_branch
          %735 = sbr.rel (%p733) target = $region120
        $region119: #{tpu_custom_call.1} parent=107 // pred_region
          %737 = dma.done [#allocation6], 512
        $region120: #{tpu_custom_call.1} parent=107 // pred_fallthru
          _
        // Predicated region
        $region121: #{tpu_custom_call.1} parent=107 // pred_check
          %p738 = pneg %p421
        $region122: #{tpu_custom_call.1} parent=107 // pred_check_branch
          %740 = sbr.rel (%p738) target = $region124
        $region123: #{tpu_custom_call.1} parent=107 // pred_region
          %742 = dma.done [#allocation9], 512
        $region124: #{tpu_custom_call.1} parent=107 // pred_fallthru
          _
        // Predicated region
        $region125: #{tpu_custom_call.1} parent=107 // pred_check
          %p743 = pneg %p505
        $region126: #{tpu_custom_call.1} parent=107 // pred_check_branch
          %745 = sbr.rel (%p743) target = $region128
        $region127: #{tpu_custom_call.1} parent=107 // pred_region
          %747 = dma.done [#allocation9], 512
        $region128: #{tpu_custom_call.1} parent=107 // pred_fallthru
          _
        %p748 = scmp.lt.s32.totalorder %s39, 3
        %s749 = scalar_select %p748, %s39, 3
        %s750 = smul.addr %s749, 8
        %s751 = scalar_lea.vmem %s0, %s750
        %p752 = pneg %p60
        %p753 = pneg %p57
        %p754 = scmp.lt.s32.totalorder %s39, 3
        %s755 = scalar_select %p754, %s39, 3
        %s756 = smul.addr %s755, 8
        %s757 = scalar_lea.vmem %s1, %s756
        %p758 = pneg %p86
        %p759 = pneg %p83
        %p760 = scmp.lt.s32.totalorder %s39, 3
        %s761 = scalar_select %p760, %s39, 3
        %s762 = smul.addr %s761, 8
        %s763 = scalar_lea.vmem %s2, %s762
        %p764 = pneg %p112
        %p765 = pneg %p109
        %p766 = scmp.lt.s32.totalorder %s39, 3
        %s767 = scalar_select %p766, %s39, 3
        %s768 = smul.addr %s767, 8
        %s769 = scalar_lea.vmem %s3, %s768
        %p770 = pneg %p138
        %p771 = pneg %p135
        %p772 = scmp.lt.s32.totalorder %s39, 3
        %s773 = scalar_select %p772, %s39, 3
        %s774 = smul.addr %s773, 8
        %s775 = scalar_lea.vmem %s4, %s774
        %p776 = pneg %p164
        %p777 = pneg %p161
        %p778 = scmp.lt.s32.totalorder %s39, 3
        %s779 = scalar_select %p778, %s39, 3
        %s780 = smul.addr %s779, 8
        %s781 = scalar_lea.vmem %s5, %s780
        %p782 = pneg %p190
        %p783 = pneg %p187
        %p784 = pneg %p211
        %p785 = pneg %p208
        %p786 = pneg %p232
        %p787 = pneg %p229
        %p788 = pneg %p253
        %p789 = pneg %p250
        %p790 = pneg %p274
        %p791 = pneg %p271
        %p792 = pneg %p295
        %p793 = pneg %p292
        %p794 = pneg %p316
        %p795 = pneg %p313
        %p796 = pneg %p337
        %p797 = pneg %p334
        %p798 = pneg %p358
        %p799 = pneg %p355
        %p800 = pneg %p379
        %p801 = pneg %p376
        %p802 = pneg %p400
        %p803 = pneg %p397
        %p804 = pneg %p421
        %p805 = pneg %p418
        %p806 = pneg %p442
        %p807 = pneg %p439
        %p808 = pneg %p463
        %p809 = pneg %p460
        %p810 = pneg %p484
        %p811 = pneg %p481
        %p812 = pneg %p505
        %p813 = pneg %p502
        %p814 = pneg %p526
        %p815 = pneg %p523
        %p816 = pneg %p552
        %p817 = pneg %p549
        %s818 = sand.u32 %s539, 1
        %s819 = scalar_lea.sflag [#allocation4], %s818
        %s820 = sand.u32 %s539, 1
        %s821 = smul.addr %s820, 8
        %s822 = scalar_lea.vmem [#allocation11], %s821
        %p823 = scmp.lt.s32.totalorder %s39, 3
        %s824 = scalar_select %p823, %s39, 3
        %s825 = smul.addr %s824, 8
        %s826 = scalar_lea.vmem %s0, %s825
        %p827 = scmp.lt.s32.totalorder %s39, 3
        %s828 = scalar_select %p827, %s39, 3
        %s829 = smul.addr %s828, 8
        %s830 = scalar_lea.vmem %s1, %s829
        %p831 = scmp.lt.s32.totalorder %s39, 3
        %s832 = scalar_select %p831, %s39, 3
        %s833 = smul.addr %s832, 8
        %s834 = scalar_lea.vmem %s2, %s833
        %p835 = scmp.lt.s32.totalorder %s39, 3
        %s836 = scalar_select %p835, %s39, 3
        %s837 = smul.addr %s836, 8
        %s838 = scalar_lea.vmem %s3, %s837
        %p839 = scmp.lt.s32.totalorder %s39, 3
        %s840 = scalar_select %p839, %s39, 3
        %s841 = smul.addr %s840, 8
        %s842 = scalar_lea.vmem %s4, %s841
        %p843 = scmp.lt.s32.totalorder %s39, 3
        %s844 = scalar_select %p843, %s39, 3
        %s845 = smul.addr %s844, 8
        %s846 = scalar_lea.vmem %s5, %s845
        %v847 = vld [vmem:[%s826] sm:$0xff]
        %v848 = vld [vmem:[%s830] sm:$0xff]
        %v849 = vld [vmem:[%s834] sm:$0xff]
        %v850 = vld [vmem:[%s838] sm:$0xff]
        %v851 = vld [vmem:[%s842] sm:$0xff]
        %v852 = vld [vmem:[%s846] sm:$0xff]
        %v853 = vld [vmem:[#allocation2] sm:$0xff]
        %v854 = vld [vmem:[#allocation2 + $0x8] sm:$0xff]
        %v855 = vld [vmem:[%s7] sm:$0x1]
        %v857 = vperm.slane %v855, 0
        %vm859 = vcmask 130048
        %v861 = vsel %vm859, %v847, 0
        %863 = vmatpush.msra.mxu0 0.0
        %864 = vmatpush.msra.mxu0 0.0
        %865 = vmatpush.msra.mxu0 0.0
        %866 = vmatpush.msra.mxu0 0.0
        %867 = vmatpush.msra.mxu0 0.0
        %868 = vmatpush.msra.mxu0 0.0
        %869 = vmatpush.msra.mxu0 0.0
        %870 = vmatpush.msra.mxu0 0.0
        %871 = vmatpush.msra.mxu0 0.0
        %872 = vmatpush.msra.mxu0 0.0
        %873 = vmatpush.msra.mxu0 0.0
        %874 = vmatpush.msra.mxu0 0.0
        %875 = vmatpush.msra.mxu0 0.0
        %876 = vmatpush.msra.mxu0 0.0
        %877 = vmatpush.msra.mxu0 %v854
        %878 = vmatpush.msra.mxu0 %v853
        %879 = vmatmul.f32.gmra.mxu0 %v861
        %v880 = vpop.f32.mrf.mxu0
        %v881 = vadd.f32 %v857, %v880
        %882 = vdwg.mxu0
        %v883 = vld [vmem:[#allocation5] sm:$0xff]
        %v884 = vld [vmem:[#allocation5 + $0x8] sm:$0xff]
        %v885 = vld [vmem:[%s9] sm:$0x1]
        %v887 = vperm.slane %v885, 0
        %v890 = vsel %vm859, %v848, 0
        %892 = vmatpush.msra.mxu0 0.0
        %893 = vmatpush.msra.mxu0 0.0
        %894 = vmatpush.msra.mxu0 0.0
        %895 = vmatpush.msra.mxu0 0.0
        %896 = vmatpush.msra.mxu0 0.0
        %897 = vmatpush.msra.mxu0 0.0
        %898 = vmatpush.msra.mxu0 0.0
        %899 = vmatpush.msra.mxu0 0.0
        %900 = vmatpush.msra.mxu0 0.0
        %901 = vmatpush.msra.mxu0 0.0
        %902 = vmatpush.msra.mxu0 0.0
        %903 = vmatpush.msra.mxu0 0.0
        %904 = vmatpush.msra.mxu0 0.0
        %905 = vmatpush.msra.mxu0 0.0
        %906 = vmatpush.msra.mxu0 %v884
        %907 = vmatpush.msra.mxu0 %v883
        %908 = vmatmul.f32.gmra.mxu0 %v890
        %v909 = vpop.f32.mrf.mxu0
        %v910 = vadd.f32 %v887, %v909
        %911 = vdwg.mxu0
        %v912 = vld [vmem:[%s10] sm:$0xff]
        %v913 = vld [vmem:[%s10 + $0x8] sm:$0xff]
        %v914 = vld [vmem:[%s10 + $0x10] sm:$0xff]
        %v915 = vld [vmem:[%s10 + $0x18] sm:$0xff]
        %v916 = vld [vmem:[%s11] sm:$0xff]
        %v917 = vld [vmem:[%s11 + $0x8] sm:$0xff]
        %v918 = vld [vmem:[%s11 + $0x10] sm:$0xff]
        %v919 = vld [vmem:[%s11 + $0x18] sm:$0xff]
        %920 = vxpose.xlu0.b32.start [1/16] %v912, 128
        %921 = vxpose.xlu0.b32.cont [2/16] %v913, 128
        %922 = vxpose.xlu0.b32.cont [3/16] %v914, 128
        %923 = vxpose.xlu0.b32.cont [4/16] %v915, 128
        %924 = vxpose.xlu0.b32.cont [5/16] 0.0, 128
        %925 = vxpose.xlu0.b32.cont [6/16] 0.0, 128
        %926 = vxpose.xlu0.b32.cont [7/16] 0.0, 128
        %927 = vxpose.xlu0.b32.cont [8/16] 0.0, 128
        %928 = vxpose.xlu0.b32.cont [9/16] 0.0, 128
        %929 = vxpose.xlu0.b32.cont [10/16] 0.0, 128
        %930 = vxpose.xlu0.b32.cont [11/16] 0.0, 128
        %931 = vxpose.xlu0.b32.cont [12/16] 0.0, 128
        %932 = vxpose.xlu0.b32.cont [13/16] 0.0, 128
        %933 = vxpose.xlu0.b32.cont [14/16] 0.0, 128
        %934 = vxpose.xlu0.b32.cont [15/16] 0.0, 128
        %935 = vxpose.xlu0.b32.end [16/16] 0.0, 128
        %v936 = vpop.trf.xlu0
        %v937 = vpop.trf.xlu0
        %v938 = vpop.trf.xlu0
        %v939 = vpop.trf.xlu0
        %v940 = vpop.trf.xlu0
        %v941 = vpop.trf.xlu0
        %v942 = vpop.trf.xlu0
        %v943 = vpop.trf.xlu0
        %v944 = vpop.trf.xlu0
        %v945 = vpop.trf.xlu0
        %v946 = vpop.trf.xlu0
        %v947 = vpop.trf.xlu0
        %v948 = vpop.trf.xlu0
        %v949 = vpop.trf.xlu0
        %v950 = vpop.trf.xlu0
        %v951 = vpop.trf.xlu0
        %vm952 = vcmask 261120
        %v954 = vsel %vm952, %v936, 0
        %v957 = vsel %vm952, %v881, 0
        %959 = vmatpush.xpose.msra.mxu0 0.0
        %960 = vmatpush.xpose.msra.mxu0 0.0
        %961 = vmatpush.xpose.msra.mxu0 0.0
        %962 = vmatpush.xpose.msra.mxu0 0.0
        %963 = vmatpush.xpose.msra.mxu0 0.0
        %964 = vmatpush.xpose.msra.mxu0 0.0
        %965 = vmatpush.xpose.msra.mxu0 0.0
        %966 = vmatpush.xpose.msra.mxu0 0.0
        %967 = vmatpush.xpose.msra.mxu0 0.0
        %968 = vmatpush.xpose.msra.mxu0 0.0
        %969 = vmatpush.xpose.msra.mxu0 0.0
        %970 = vmatpush.xpose.msra.mxu0 0.0
        %971 = vmatpush.xpose.msra.mxu0 0.0
        %972 = vmatpush.xpose.msra.mxu0 0.0
        %973 = vmatpush.xpose.msra.mxu0 0.0
        %974 = vmatpush.xpose.msra.mxu0 %v957
        %975 = vmatmul.f32.gmra.mxu0 %v954
        %v976 = vpop.f32.mrf.mxu0
        %v977 = vadd.f32 0.0, %v976
        %978 = vdwg.mxu0
        %v980 = vsel %vm952, %v910, 0
        %982 = vmatpush.msra.mxu0 0.0
        %983 = vmatpush.msra.mxu0 0.0
        %984 = vmatpush.msra.mxu0 0.0
        %985 = vmatpush.msra.mxu0 0.0
        %986 = vmatpush.msra.mxu0 0.0
        %987 = vmatpush.msra.mxu0 0.0
        %988 = vmatpush.msra.mxu0 0.0
        %989 = vmatpush.msra.mxu0 0.0
        %990 = vmatpush.msra.mxu0 0.0
        %991 = vmatpush.msra.mxu0 0.0
        %992 = vmatpush.msra.mxu0 0.0
        %993 = vmatpush.msra.mxu0 0.0
        %994 = vmatpush.msra.mxu0 %v919
        %995 = vmatpush.msra.mxu0 %v918
        %996 = vmatpush.msra.mxu0 %v917
        %997 = vmatpush.msra.mxu0 %v916
        %998 = vmatmul.f32.gmra.mxu0 %v980
        %v999 = vpop.f32.mrf.mxu0
        %v1000 = vadd.f32 0.0, %v999
        %1001 = vdwg.mxu0
        %v1002 = vlaneseq
        %v1003 = vand.u32 %v1002, 127
        %1005 = vset.pattern.permute.xlu0 0
        %1006 = vperm.xlu0 %1005, %v1000
        %v1007 = vpop.permute.xlu0 %1006
        %v1009 = vperm.slane %v977, 0
        %v1010 = vadd.f32 %v1007, %v1009
        %v1011 = vmul.f32 %v1010, 0.2
        %v1012 = vmax.f32 %v1010, %v1011
        %v1013 = vadd.f32 %v1012, %v850
        %vm1014 = vcmask 64512
        %v1015 = vsel %vm1014, %v1013, -inf
        %1016 = vmax.xlane.f32.xlu0 %v1015
        %v1017 = vpop.xlane.xlu0 %1016
        %v1018 = vsub.f32 %v1013, %v1017
        %v1019 = vmul.f32 %v1018, 1.442695
        %v1020 = vpow.pop %v1019
        %v1021 = vmul.f32 %v1020, %v849
        %v1022 = vsel %vm1014, %v1021, 0.0
        %1023 = vadd.xlane.f32.xlu0 %v1022
        %v1024 = vpop.xlane.xlu0 %1023
        %vm1025 = vcmp.gt.f32.partialorder %v1024, 0.0
        %v1026 = vsel %vm1025, %v1024, 1.0
        %v1027 = vrcp.pop %v1026
        %v1028 = vmul.f32 %v1021, %v1027
        %vm1029 = vcmp.ge.s32.totalorder %v1003, 0
        %vm1030 = vcmp.lt.s32.totalorder %v1003, 16
        %vm1031 = vmand %vm1029, %vm1030
        %v1032 = vsel %vm1031, 1, 0
        %v1033 = vcvt.s32.f32 %v1032
        %v1034 = vmul.f32 %v881, %v1033
        %1035 = vset.pattern.permute.xlu0 1
        %1036 = vperm.xlu0 %1035, %v1000
        %v1037 = vpop.permute.xlu0 %1036
        %v1039 = vperm.slane %v977, 1
        %v1040 = vadd.f32 %v1037, %v1039
        %v1041 = vmul.f32 %v1040, 0.2
        %v1042 = vmax.f32 %v1040, %v1041
        %v1043 = vadd.f32 %v1042, %v850
        %v1044 = vsel %vm1014, %v1043, -inf
        %1045 = vmax.xlane.f32.xlu0 %v1044
        %v1046 = vpop.xlane.xlu0 %1045
        %v1047 = vsub.f32 %v1043, %v1046
        %v1048 = vmul.f32 %v1047, 1.442695
        %v1049 = vpow.pop %v1048
        %v1050 = vmul.f32 %v1049, %v849
        %v1051 = vsel %vm1014, %v1050, 0.0
        %1052 = vadd.xlane.f32.xlu0 %v1051
        %v1053 = vpop.xlane.xlu0 %1052
        %vm1054 = vcmp.gt.f32.partialorder %v1053, 0.0
        %v1055 = vsel %vm1054, %v1053, 1.0
        %v1056 = vrcp.pop %v1055
        %v1057 = vmul.f32 %v1050, %v1056
        %vm1058 = vcmp.ge.s32.totalorder %v1003, 16
        %vm1059 = vcmp.lt.s32.totalorder %v1003, 32
        %vm1060 = vmand %vm1058, %vm1059
        %v1061 = vsel %vm1060, 1, 0
        %v1062 = vcvt.s32.f32 %v1061
        %v1063 = vmul.f32 %v881, %v1062
        %v1065 = vsel %vm1014, %v1057, 0
        %1067 = vmatpush.msra.mxu0 0.0
        %1068 = vmatpush.msra.mxu0 0.0
        %1069 = vmatpush.msra.mxu0 0.0
        %1070 = vmatpush.msra.mxu0 0.0
        %1071 = vmatpush.msra.mxu0 0.0
        %1072 = vmatpush.msra.mxu0 0.0
        %1073 = vmatpush.msra.mxu0 0.0
        %1074 = vmatpush.msra.mxu0 0.0
        %1075 = vmatpush.msra.mxu0 0.0
        %1076 = vmatpush.msra.mxu0 0.0
        %1077 = vmatpush.msra.mxu0 0.0
        %1078 = vmatpush.msra.mxu0 0.0
        %1079 = vmatpush.msra.mxu0 0.0
        %1080 = vmatpush.msra.mxu0 0.0
        %1081 = vmatpush.msra.mxu0 0.0
        %1082 = vmatpush.msra.mxu0 %v1063
        %1083 = vmatmul.f32.gmra.mxu0 %v1065
        %v1084 = vpop.f32.mrf.mxu0
        %v1085 = vadd.f32 0.0, %v1084
        %1086 = vdwg.mxu0
        %v1088 = vsel %vm1014, %v1028, 0
        %1090 = vmatpush.msra.mxu0 0.0
        %1091 = vmatpush.msra.mxu0 0.0
        %1092 = vmatpush.msra.mxu0 0.0
        %1093 = vmatpush.msra.mxu0 0.0
        %1094 = vmatpush.msra.mxu0 0.0
        %1095 = vmatpush.msra.mxu0 0.0
        %1096 = vmatpush.msra.mxu0 0.0
        %1097 = vmatpush.msra.mxu0 0.0
        %1098 = vmatpush.msra.mxu0 0.0
        %1099 = vmatpush.msra.mxu0 0.0
        %1100 = vmatpush.msra.mxu0 0.0
        %1101 = vmatpush.msra.mxu0 0.0
        %1102 = vmatpush.msra.mxu0 0.0
        %1103 = vmatpush.msra.mxu0 0.0
        %1104 = vmatpush.msra.mxu0 0.0
        %1105 = vmatpush.msra.mxu0 %v1034
        %1106 = vmatmul.f32.gmra.mxu0 %v1088
        %v1107 = vpop.f32.mrf.mxu0
        %v1108 = vadd.f32 %v1085, %v1107
        %1109 = vdwg.mxu0
        %v1110 = vmax.f32 %v1108, 0.0
        %v1111 = vld [vmem:[%s12] sm:$0xff]
        %v1112 = vld [vmem:[%s12 + $0x8] sm:$0xff]
        %v1113 = vld [vmem:[%s12 + $0x10] sm:$0xff]
        %v1114 = vld [vmem:[%s12 + $0x18] sm:$0xff]
        %v1115 = vld [vmem:[%s13] sm:$0xff]
        %v1116 = vld [vmem:[%s13 + $0x8] sm:$0xff]
        %v1117 = vld [vmem:[%s13 + $0x10] sm:$0xff]
        %v1118 = vld [vmem:[%s13 + $0x18] sm:$0xff]
        %1119 = vxpose.xlu0.b32.start [1/16] %v1111, 128
        %1120 = vxpose.xlu0.b32.cont [2/16] %v1112, 128
        %1121 = vxpose.xlu0.b32.cont [3/16] %v1113, 128
        %1122 = vxpose.xlu0.b32.cont [4/16] %v1114, 128
        %1123 = vxpose.xlu0.b32.cont [5/16] 0.0, 128
        %1124 = vxpose.xlu0.b32.cont [6/16] 0.0, 128
        %1125 = vxpose.xlu0.b32.cont [7/16] 0.0, 128
        %1126 = vxpose.xlu0.b32.cont [8/16] 0.0, 128
        %1127 = vxpose.xlu0.b32.cont [9/16] 0.0, 128
        %1128 = vxpose.xlu0.b32.cont [10/16] 0.0, 128
        %1129 = vxpose.xlu0.b32.cont [11/16] 0.0, 128
        %1130 = vxpose.xlu0.b32.cont [12/16] 0.0, 128
        %1131 = vxpose.xlu0.b32.cont [13/16] 0.0, 128
        %1132 = vxpose.xlu0.b32.cont [14/16] 0.0, 128
        %1133 = vxpose.xlu0.b32.cont [15/16] 0.0, 128
        %1134 = vxpose.xlu0.b32.end [16/16] 0.0, 128
        %v1135 = vpop.trf.xlu0
        %v1136 = vpop.trf.xlu0
        %v1137 = vpop.trf.xlu0
        %v1138 = vpop.trf.xlu0
        %v1139 = vpop.trf.xlu0
        %v1140 = vpop.trf.xlu0
        %v1141 = vpop.trf.xlu0
        %v1142 = vpop.trf.xlu0
        %v1143 = vpop.trf.xlu0
        %v1144 = vpop.trf.xlu0
        %v1145 = vpop.trf.xlu0
        %v1146 = vpop.trf.xlu0
        %v1147 = vpop.trf.xlu0
        %v1148 = vpop.trf.xlu0
        %v1149 = vpop.trf.xlu0
        %v1150 = vpop.trf.xlu0
        %v1152 = vsel %vm952, %v1135, 0
        %1154 = vmatpush.xpose.msra.mxu0 0.0
        %1155 = vmatpush.xpose.msra.mxu0 0.0
        %1156 = vmatpush.xpose.msra.mxu0 0.0
        %1157 = vmatpush.xpose.msra.mxu0 0.0
        %1158 = vmatpush.xpose.msra.mxu0 0.0
        %1159 = vmatpush.xpose.msra.mxu0 0.0
        %1160 = vmatpush.xpose.msra.mxu0 0.0
        %1161 = vmatpush.xpose.msra.mxu0 0.0
        %1162 = vmatpush.xpose.msra.mxu0 0.0
        %1163 = vmatpush.xpose.msra.mxu0 0.0
        %1164 = vmatpush.xpose.msra.mxu0 0.0
        %1165 = vmatpush.xpose.msra.mxu0 0.0
        %1166 = vmatpush.xpose.msra.mxu0 0.0
        %1167 = vmatpush.xpose.msra.mxu0 0.0
        %1168 = vmatpush.xpose.msra.mxu0 0.0
        %1169 = vmatpush.xpose.msra.mxu0 %v980
        %1170 = vmatmul.f32.gmra.mxu0 %v1152
        %v1171 = vpop.f32.mrf.mxu0
        %v1172 = vadd.f32 0.0, %v1171
        %1173 = vdwg.mxu0
        %1174 = vmatpush.msra.mxu0 0.0
        %1175 = vmatpush.msra.mxu0 0.0
        %1176 = vmatpush.msra.mxu0 0.0
        %1177 = vmatpush.msra.mxu0 0.0
        %1178 = vmatpush.msra.mxu0 0.0
        %1179 = vmatpush.msra.mxu0 0.0
        %1180 = vmatpush.msra.mxu0 0.0
        %1181 = vmatpush.msra.mxu0 0.0
        %1182 = vmatpush.msra.mxu0 0.0
        %1183 = vmatpush.msra.mxu0 0.0
        %1184 = vmatpush.msra.mxu0 0.0
        %1185 = vmatpush.msra.mxu0 0.0
        %1186 = vmatpush.msra.mxu0 %v1118
        %1187 = vmatpush.msra.mxu0 %v1117
        %1188 = vmatpush.msra.mxu0 %v1116
        %1189 = vmatpush.msra.mxu0 %v1115
        %1190 = vmatmul.f32.gmra.mxu0 %v957
        %v1191 = vpop.f32.mrf.mxu0
        %v1192 = vadd.f32 0.0, %v1191
        %1193 = vdwg.mxu0
        %1195 = vset.pattern.permute.xlu0 0
        %1196 = vperm.xlu0 %1195, %v1192
        %v1197 = vpop.permute.xlu0 %1196
        %v1199 = vperm.slane %v1172, 0
        %v1200 = vadd.f32 %v1197, %v1199
        %v1201 = vmul.f32 %v1200, 0.2
        %v1202 = vmax.f32 %v1200, %v1201
        %v1203 = vadd.f32 %v1202, %v852
        %v1204 = vsel %vm1014, %v1203, -inf
        %1205 = vmax.xlane.f32.xlu0 %v1204
        %v1206 = vpop.xlane.xlu0 %1205
        %v1207 = vsub.f32 %v1203, %v1206
        %v1208 = vmul.f32 %v1207, 1.442695
        %v1209 = vpow.pop %v1208
        %v1210 = vmul.f32 %v1209, %v851
        %v1211 = vsel %vm1014, %v1210, 0.0
        %1212 = vadd.xlane.f32.xlu0 %v1211
        %v1213 = vpop.xlane.xlu0 %1212
        %vm1214 = vcmp.gt.f32.partialorder %v1213, 0.0
        %v1215 = vsel %vm1214, %v1213, 1.0
        %v1216 = vrcp.pop %v1215
        %v1217 = vmul.f32 %v1210, %v1216
        %v1218 = vmul.f32 %v910, %v1033
        %1219 = vset.pattern.permute.xlu0 1
        %1220 = vperm.xlu0 %1219, %v1192
        %v1221 = vpop.permute.xlu0 %1220
        %v1223 = vperm.slane %v1172, 1
        %v1224 = vadd.f32 %v1221, %v1223
        %v1225 = vmul.f32 %v1224, 0.2
        %v1226 = vmax.f32 %v1224, %v1225
        %v1227 = vadd.f32 %v1226, %v852
        %v1228 = vsel %vm1014, %v1227, -inf
        %1229 = vmax.xlane.f32.xlu0 %v1228
        %v1230 = vpop.xlane.xlu0 %1229
        %v1231 = vsub.f32 %v1227, %v1230
        %v1232 = vmul.f32 %v1231, 1.442695
        %v1233 = vpow.pop %v1232
        %v1234 = vmul.f32 %v1233, %v851
        %v1235 = vsel %vm1014, %v1234, 0.0
        %1236 = vadd.xlane.f32.xlu0 %v1235
        %v1237 = vpop.xlane.xlu0 %1236
        %vm1238 = vcmp.gt.f32.partialorder %v1237, 0.0
        %v1239 = vsel %vm1238, %v1237, 1.0
        %v1240 = vrcp.pop %v1239
        %v1241 = vmul.f32 %v1234, %v1240
        %v1242 = vmul.f32 %v910, %v1062
        %v1244 = vsel %vm1014, %v1241, 0
        %1246 = vmatpush.msra.mxu0 0.0
        %1247 = vmatpush.msra.mxu0 0.0
        %1248 = vmatpush.msra.mxu0 0.0
        %1249 = vmatpush.msra.mxu0 0.0
        %1250 = vmatpush.msra.mxu0 0.0
        %1251 = vmatpush.msra.mxu0 0.0
        %1252 = vmatpush.msra.mxu0 0.0
        %1253 = vmatpush.msra.mxu0 0.0
        %1254 = vmatpush.msra.mxu0 0.0
        %1255 = vmatpush.msra.mxu0 0.0
        %1256 = vmatpush.msra.mxu0 0.0
        %1257 = vmatpush.msra.mxu0 0.0
        %1258 = vmatpush.msra.mxu0 0.0
        %1259 = vmatpush.msra.mxu0 0.0
        %1260 = vmatpush.msra.mxu0 0.0
        %1261 = vmatpush.msra.mxu0 %v1242
        %1262 = vmatmul.f32.gmra.mxu0 %v1244
        %v1263 = vpop.f32.mrf.mxu0
        %v1264 = vadd.f32 0.0, %v1263
        %1265 = vdwg.mxu0
        %v1267 = vsel %vm1014, %v1217, 0
        %1269 = vmatpush.msra.mxu0 0.0
        %1270 = vmatpush.msra.mxu0 0.0
        %1271 = vmatpush.msra.mxu0 0.0
        %1272 = vmatpush.msra.mxu0 0.0
        %1273 = vmatpush.msra.mxu0 0.0
        %1274 = vmatpush.msra.mxu0 0.0
        %1275 = vmatpush.msra.mxu0 0.0
        %1276 = vmatpush.msra.mxu0 0.0
        %1277 = vmatpush.msra.mxu0 0.0
        %1278 = vmatpush.msra.mxu0 0.0
        %1279 = vmatpush.msra.mxu0 0.0
        %1280 = vmatpush.msra.mxu0 0.0
        %1281 = vmatpush.msra.mxu0 0.0
        %1282 = vmatpush.msra.mxu0 0.0
        %1283 = vmatpush.msra.mxu0 0.0
        %1284 = vmatpush.msra.mxu0 %v1218
        %1285 = vmatmul.f32.gmra.mxu0 %v1267
        %v1286 = vpop.f32.mrf.mxu0
        %v1287 = vadd.f32 %v1264, %v1286
        %1288 = vdwg.mxu0
        %v1289 = vmax.f32 %v1287, 0.0
        %v1290 = vld [vmem:[#allocation7] sm:$0xff]
        %v1291 = vld [vmem:[#allocation7 + $0x8] sm:$0xff]
        %v1292 = vld [vmem:[#allocation7 + $0x10] sm:$0xff]
        %v1293 = vld [vmem:[#allocation7 + $0x18] sm:$0xff]
        %v1294 = vld [vmem:[%s15] sm:$0x1]
        %v1296 = vperm.slane %v1294, 0
        %v1299 = vsel %vm952, %v1289, 0
        %1301 = vmatpush.msra.mxu0 0.0
        %1302 = vmatpush.msra.mxu0 0.0
        %1303 = vmatpush.msra.mxu0 0.0
        %1304 = vmatpush.msra.mxu0 0.0
        %1305 = vmatpush.msra.mxu0 0.0
        %1306 = vmatpush.msra.mxu0 0.0
        %1307 = vmatpush.msra.mxu0 0.0
        %1308 = vmatpush.msra.mxu0 0.0
        %1309 = vmatpush.msra.mxu0 0.0
        %1310 = vmatpush.msra.mxu0 0.0
        %1311 = vmatpush.msra.mxu0 0.0
        %1312 = vmatpush.msra.mxu0 0.0
        %1313 = vmatpush.msra.mxu0 %v1293
        %1314 = vmatpush.msra.mxu0 %v1292
        %1315 = vmatpush.msra.mxu0 %v1291
        %1316 = vmatpush.msra.mxu0 %v1290
        %1317 = vmatmul.f32.gmra.mxu0 %v1299
        %v1318 = vpop.f32.mrf.mxu0
        %v1319 = vadd.f32 %v1296, %v1318
        %1320 = vdwg.mxu0
        %v1321 = vld [vmem:[#allocation8] sm:$0xff]
        %v1322 = vld [vmem:[#allocation8 + $0x8] sm:$0xff]
        %v1323 = vld [vmem:[#allocation8 + $0x10] sm:$0xff]
        %v1324 = vld [vmem:[#allocation8 + $0x18] sm:$0xff]
        %v1325 = vld [vmem:[%s17] sm:$0x1]
        %v1327 = vperm.slane %v1325, 0
        %v1330 = vsel %vm952, %v1110, 0
        %1332 = vmatpush.msra.mxu0 0.0
        %1333 = vmatpush.msra.mxu0 0.0
        %1334 = vmatpush.msra.mxu0 0.0
        %1335 = vmatpush.msra.mxu0 0.0
        %1336 = vmatpush.msra.mxu0 0.0
        %1337 = vmatpush.msra.mxu0 0.0
        %1338 = vmatpush.msra.mxu0 0.0
        %1339 = vmatpush.msra.mxu0 0.0
        %1340 = vmatpush.msra.mxu0 0.0
        %1341 = vmatpush.msra.mxu0 0.0
        %1342 = vmatpush.msra.mxu0 0.0
        %1343 = vmatpush.msra.mxu0 0.0
        %1344 = vmatpush.msra.mxu0 %v1324
        %1345 = vmatpush.msra.mxu0 %v1323
        %1346 = vmatpush.msra.mxu0 %v1322
        %1347 = vmatpush.msra.mxu0 %v1321
        %1348 = vmatmul.f32.gmra.mxu0 %v1330
        %v1349 = vpop.f32.mrf.mxu0
        %v1350 = vadd.f32 %v1327, %v1349
        %1351 = vdwg.mxu0
        %v1352 = vld [vmem:[%s18] sm:$0xff]
        %v1353 = vld [vmem:[%s18 + $0x8] sm:$0xff]
        %v1354 = vld [vmem:[%s18 + $0x10] sm:$0xff]
        %v1355 = vld [vmem:[%s18 + $0x18] sm:$0xff]
        %v1356 = vld [vmem:[%s19] sm:$0xff]
        %v1357 = vld [vmem:[%s19 + $0x8] sm:$0xff]
        %v1358 = vld [vmem:[%s19 + $0x10] sm:$0xff]
        %v1359 = vld [vmem:[%s19 + $0x18] sm:$0xff]
        %1360 = vxpose.xlu0.b32.start [1/16] %v1352, 128
        %1361 = vxpose.xlu0.b32.cont [2/16] %v1353, 128
        %1362 = vxpose.xlu0.b32.cont [3/16] %v1354, 128
        %1363 = vxpose.xlu0.b32.cont [4/16] %v1355, 128
        %1364 = vxpose.xlu0.b32.cont [5/16] 0.0, 128
        %1365 = vxpose.xlu0.b32.cont [6/16] 0.0, 128
        %1366 = vxpose.xlu0.b32.cont [7/16] 0.0, 128
        %1367 = vxpose.xlu0.b32.cont [8/16] 0.0, 128
        %1368 = vxpose.xlu0.b32.cont [9/16] 0.0, 128
        %1369 = vxpose.xlu0.b32.cont [10/16] 0.0, 128
        %1370 = vxpose.xlu0.b32.cont [11/16] 0.0, 128
        %1371 = vxpose.xlu0.b32.cont [12/16] 0.0, 128
        %1372 = vxpose.xlu0.b32.cont [13/16] 0.0, 128
        %1373 = vxpose.xlu0.b32.cont [14/16] 0.0, 128
        %1374 = vxpose.xlu0.b32.cont [15/16] 0.0, 128
        %1375 = vxpose.xlu0.b32.end [16/16] 0.0, 128
        %v1376 = vpop.trf.xlu0
        %v1377 = vpop.trf.xlu0
        %v1378 = vpop.trf.xlu0
        %v1379 = vpop.trf.xlu0
        %v1380 = vpop.trf.xlu0
        %v1381 = vpop.trf.xlu0
        %v1382 = vpop.trf.xlu0
        %v1383 = vpop.trf.xlu0
        %v1384 = vpop.trf.xlu0
        %v1385 = vpop.trf.xlu0
        %v1386 = vpop.trf.xlu0
        %v1387 = vpop.trf.xlu0
        %v1388 = vpop.trf.xlu0
        %v1389 = vpop.trf.xlu0
        %v1390 = vpop.trf.xlu0
        %v1391 = vpop.trf.xlu0
        %v1393 = vsel %vm952, %v1376, 0
        %v1396 = vsel %vm952, %v1350, 0
        %1398 = vmatpush.xpose.msra.mxu0 0.0
        %1399 = vmatpush.xpose.msra.mxu0 0.0
        %1400 = vmatpush.xpose.msra.mxu0 0.0
        %1401 = vmatpush.xpose.msra.mxu0 0.0
        %1402 = vmatpush.xpose.msra.mxu0 0.0
        %1403 = vmatpush.xpose.msra.mxu0 0.0
        %1404 = vmatpush.xpose.msra.mxu0 0.0
        %1405 = vmatpush.xpose.msra.mxu0 0.0
        %1406 = vmatpush.xpose.msra.mxu0 0.0
        %1407 = vmatpush.xpose.msra.mxu0 0.0
        %1408 = vmatpush.xpose.msra.mxu0 0.0
        %1409 = vmatpush.xpose.msra.mxu0 0.0
        %1410 = vmatpush.xpose.msra.mxu0 0.0
        %1411 = vmatpush.xpose.msra.mxu0 0.0
        %1412 = vmatpush.xpose.msra.mxu0 0.0
        %1413 = vmatpush.xpose.msra.mxu0 %v1396
        %1414 = vmatmul.f32.gmra.mxu0 %v1393
        %v1415 = vpop.f32.mrf.mxu0
        %v1416 = vadd.f32 0.0, %v1415
        %1417 = vdwg.mxu0
        %v1419 = vsel %vm952, %v1319, 0
        %1421 = vmatpush.msra.mxu0 0.0
        %1422 = vmatpush.msra.mxu0 0.0
        %1423 = vmatpush.msra.mxu0 0.0
        %1424 = vmatpush.msra.mxu0 0.0
        %1425 = vmatpush.msra.mxu0 0.0
        %1426 = vmatpush.msra.mxu0 0.0
        %1427 = vmatpush.msra.mxu0 0.0
        %1428 = vmatpush.msra.mxu0 0.0
        %1429 = vmatpush.msra.mxu0 0.0
        %1430 = vmatpush.msra.mxu0 0.0
        %1431 = vmatpush.msra.mxu0 0.0
        %1432 = vmatpush.msra.mxu0 0.0
        %1433 = vmatpush.msra.mxu0 %v1359
        %1434 = vmatpush.msra.mxu0 %v1358
        %1435 = vmatpush.msra.mxu0 %v1357
        %1436 = vmatpush.msra.mxu0 %v1356
        %1437 = vmatmul.f32.gmra.mxu0 %v1419
        %v1438 = vpop.f32.mrf.mxu0
        %v1439 = vadd.f32 0.0, %v1438
        %1440 = vdwg.mxu0
        %1442 = vset.pattern.permute.xlu0 0
        %1443 = vperm.xlu0 %1442, %v1439
        %v1444 = vpop.permute.xlu0 %1443
        %v1446 = vperm.slane %v1416, 0
        %v1447 = vadd.f32 %v1444, %v1446
        %v1448 = vmul.f32 %v1447, 0.2
        %v1449 = vmax.f32 %v1447, %v1448
        %v1450 = vadd.f32 %v1449, %v852
        %v1451 = vsel %vm1014, %v1450, -inf
        %1452 = vmax.xlane.f32.xlu0 %v1451
        %v1453 = vpop.xlane.xlu0 %1452
        %v1454 = vsub.f32 %v1450, %v1453
        %v1455 = vmul.f32 %v1454, 1.442695
        %v1456 = vpow.pop %v1455
        %v1457 = vmul.f32 %v1456, %v851
        %v1458 = vsel %vm1014, %v1457, 0.0
        %1459 = vadd.xlane.f32.xlu0 %v1458
        %v1460 = vpop.xlane.xlu0 %1459
        %vm1461 = vcmp.gt.f32.partialorder %v1460, 0.0
        %v1462 = vsel %vm1461, %v1460, 1.0
        %v1463 = vrcp.pop %v1462
        %v1464 = vmul.f32 %v1457, %v1463
        %v1465 = vmul.f32 %v1350, %v1033
        %1466 = vset.pattern.permute.xlu0 1
        %1467 = vperm.xlu0 %1466, %v1439
        %v1468 = vpop.permute.xlu0 %1467
        %v1470 = vperm.slane %v1416, 1
        %v1471 = vadd.f32 %v1468, %v1470
        %v1472 = vmul.f32 %v1471, 0.2
        %v1473 = vmax.f32 %v1471, %v1472
        %v1474 = vadd.f32 %v1473, %v852
        %v1475 = vsel %vm1014, %v1474, -inf
        %1476 = vmax.xlane.f32.xlu0 %v1475
        %v1477 = vpop.xlane.xlu0 %1476
        %v1478 = vsub.f32 %v1474, %v1477
        %v1479 = vmul.f32 %v1478, 1.442695
        %v1480 = vpow.pop %v1479
        %v1481 = vmul.f32 %v1480, %v851
        %v1482 = vsel %vm1014, %v1481, 0.0
        %1483 = vadd.xlane.f32.xlu0 %v1482
        %v1484 = vpop.xlane.xlu0 %1483
        %vm1485 = vcmp.gt.f32.partialorder %v1484, 0.0
        %v1486 = vsel %vm1485, %v1484, 1.0
        %v1487 = vrcp.pop %v1486
        %v1488 = vmul.f32 %v1481, %v1487
        %v1489 = vmul.f32 %v1350, %v1062
        %v1491 = vsel %vm1014, %v1488, 0
        %1493 = vmatpush.msra.mxu0 0.0
        %1494 = vmatpush.msra.mxu0 0.0
        %1495 = vmatpush.msra.mxu0 0.0
        %1496 = vmatpush.msra.mxu0 0.0
        %1497 = vmatpush.msra.mxu0 0.0
        %1498 = vmatpush.msra.mxu0 0.0
        %1499 = vmatpush.msra.mxu0 0.0
        %1500 = vmatpush.msra.mxu0 0.0
        %1501 = vmatpush.msra.mxu0 0.0
        %1502 = vmatpush.msra.mxu0 0.0
        %1503 = vmatpush.msra.mxu0 0.0
        %1504 = vmatpush.msra.mxu0 0.0
        %1505 = vmatpush.msra.mxu0 0.0
        %1506 = vmatpush.msra.mxu0 0.0
        %1507 = vmatpush.msra.mxu0 0.0
        %1508 = vmatpush.msra.mxu0 %v1489
        %1509 = vmatmul.f32.gmra.mxu0 %v1491
        %v1510 = vpop.f32.mrf.mxu0
        %v1511 = vadd.f32 0.0, %v1510
        %1512 = vdwg.mxu0
        %v1514 = vsel %vm1014, %v1464, 0
        %1516 = vmatpush.msra.mxu0 0.0
        %1517 = vmatpush.msra.mxu0 0.0
        %1518 = vmatpush.msra.mxu0 0.0
        %1519 = vmatpush.msra.mxu0 0.0
        %1520 = vmatpush.msra.mxu0 0.0
        %1521 = vmatpush.msra.mxu0 0.0
        %1522 = vmatpush.msra.mxu0 0.0
        %1523 = vmatpush.msra.mxu0 0.0
        %1524 = vmatpush.msra.mxu0 0.0
        %1525 = vmatpush.msra.mxu0 0.0
        %1526 = vmatpush.msra.mxu0 0.0
        %1527 = vmatpush.msra.mxu0 0.0
        %1528 = vmatpush.msra.mxu0 0.0
        %1529 = vmatpush.msra.mxu0 0.0
        %1530 = vmatpush.msra.mxu0 0.0
        %1531 = vmatpush.msra.mxu0 %v1465
        %1532 = vmatmul.f32.gmra.mxu0 %v1514
        %v1533 = vpop.f32.mrf.mxu0
        %v1534 = vadd.f32 %v1511, %v1533
        %1535 = vdwg.mxu0
        %v1536 = vmax.f32 %v1534, 0.0
        %v1537 = vadd.f32 %v1536, %v1289
        %v1538 = vld [vmem:[#allocation10] sm:$0xff]
        %v1539 = vld [vmem:[#allocation10 + $0x8] sm:$0xff]
        %v1540 = vld [vmem:[#allocation10 + $0x10] sm:$0xff]
        %v1541 = vld [vmem:[#allocation10 + $0x18] sm:$0xff]
        %v1542 = vld [vmem:[%s21] sm:$0x1]
        %v1544 = vperm.slane %v1542, 0
        %v1547 = vsel %vm952, %v1537, 0
        %1549 = vmatpush.msra.mxu0 0.0
        %1550 = vmatpush.msra.mxu0 0.0
        %1551 = vmatpush.msra.mxu0 0.0
        %1552 = vmatpush.msra.mxu0 0.0
        %1553 = vmatpush.msra.mxu0 0.0
        %1554 = vmatpush.msra.mxu0 0.0
        %1555 = vmatpush.msra.mxu0 0.0
        %1556 = vmatpush.msra.mxu0 0.0
        %1557 = vmatpush.msra.mxu0 0.0
        %1558 = vmatpush.msra.mxu0 0.0
        %1559 = vmatpush.msra.mxu0 0.0
        %1560 = vmatpush.msra.mxu0 0.0
        %1561 = vmatpush.msra.mxu0 %v1541
        %1562 = vmatpush.msra.mxu0 %v1540
        %1563 = vmatpush.msra.mxu0 %v1539
        %1564 = vmatpush.msra.mxu0 %v1538
        %1565 = vmatmul.f32.gmra.mxu0 %v1547
        %v1566 = vpop.f32.mrf.mxu0
        %v1567 = vadd.f32 %v1544, %v1566
        %1568 = vdwg.mxu0
        %v1569 = vxor.u32 %v1567, 2147483648
        %v1570 = vmul.f32 %v1569, 1.442695
        %v1571 = vpow.pop %v1570
        %v1572 = vadd.f32 %v1571, 1.0
        %v1573 = vrcp.pop %v1572
        %v1574 = vmul.f32 %v1572, %v1573
        %v1575 = vsub.f32 1.0, %v1574
        %v1576 = vmul.f32 %v1573, %v1575
        %v1577 = vadd.f32 %v1573, %v1576
        %vm1578 = vweird.f32 %v1572
        %vm1579 = vweird.f32 %v1573
        %vm1580 = vmor %vm1578, %vm1579
        %v1581 = vsel %vm1580, %v1573, %v1577
        %v1582 = vand.u32 2147483647, %v1572
        %vm1583 = vcmp.eq.f32.partialorder %v1582, 8.507059e+37
        %v1584 = vand.u32 %v1572, 2147483648
        %v1585 = vor.u32 1.1754944e-38, %v1584
        %v1586 = vsel %vm1583, %v1585, %v1581
        %v1587 = vmul.f32 1.0, %v1586
        %1588 = vst [vmem:[%s822] sm:$0xff] %v1587
        %s1589 = sand.u32 %s539, 1
        %s1590 = scalar_lea.sflag [#allocation4], %s1589
        %s1591 = sand.u32 %s539, 1
        %s1592 = smul.addr %s1591, 8
        %s1593 = scalar_lea.vmem [#allocation11], %s1592
        // Predicated region
        $region129: #{tpu_custom_call.1} parent=107 // pred_check
          %p1594 = pneg %p549
        $region130: #{tpu_custom_call.1} parent=107 // pred_check_branch
          %1596 = sbr.rel (%p1594) target = $region132
        $region131: #{tpu_custom_call.1} parent=107 // pred_region
          %1598 = vsyncadd %s1590, 0
          %s1599 = smul.addr %s39, 8
          %s1600 = scalar_lea.hbm %s22, %s1599
          %s1602 = sshll.u32 %s1593, 4
          %s1603 = int_to_ptr.vmem [resolvable:$true] %s1602
          %s1604 = sshll.u32 %s1600, 4
          %s1605 = int_to_ptr.hbm [resolvable:$true] %s1604
          %1607 = dma.vmem_to_hbm [thread:$0]  %s1603, 128, %s1605, %s1590
        $region132: #{tpu_custom_call.1} parent=107 // pred_fallthru
          _
      $region108: #{tpu_custom_call.1} parent=5 // pred_fallthru
        _
      %p1608 = scmp.le.s32.totalorder 2, %s34
      // Predicated region
      $region133: #{tpu_custom_call.1} parent=5 // pred_check
        %p1609 = pneg %p1608
      $region134: #{tpu_custom_call.1} parent=5 // pred_check_branch
        %1611 = sbr.rel (%p1609) target = $region136
      $region135: #{tpu_custom_call.1} parent=5 // pred_region
        %s1612 = ssub.s32 %s34, 2
        // Predicated region
        $region137: #{tpu_custom_call.1} parent=135 // pred_check
          %p1613 = pneg %p555
        $region138: #{tpu_custom_call.1} parent=135 // pred_check_branch
          %1615 = sbr.rel (%p1613) target = $region140
        $region139: #{tpu_custom_call.1} parent=135 // pred_region
          %s1616 = sand.u32 %s540, 1
          %s1617 = scalar_lea.sflag [#allocation4], %s1616
          %s1618 = sand.u32 %s540, 1
          %s1619 = smul.addr %s1618, 8
          %s1620 = scalar_lea.vmem [#allocation11], %s1619
          %1622 = dma.done %s1617, 128
        $region140: #{tpu_custom_call.1} parent=135 // pred_fallthru
          _
      $region136: #{tpu_custom_call.1} parent=5 // pred_fallthru
        _
    $region6: #{tpu_custom_call.1} parent=1 // loop_footer
      %s38 = sadd.s32 1, %s34
    $region7: #{tpu_custom_call.1} parent=1 // loop_footer_branch
      %33 = sbr.rel target = $region3
    $region8: #{tpu_custom_call.1} parent=1 // loop_exit
      _
    %1623 = vsyncpa [#allocation3], 1
    %s1624 = scalar_lea.sflag [#allocation3], 1
    %1625 = vsyncpa %s1624, 1
    %1626 = vsyncpa [#allocation6], 1
    %1627 = vsyncpa [#allocation9], 1
    %1628 = vsyncpa [#allocation4], 1
    %s1629 = scalar_lea.sflag [#allocation4], 1
    %1630 = vsyncpa %s1629, 1

</llo_original>
